<compile_context>
chip_gen: v6e
topology: v6e:2x2x1
jax: 0.10.0
libtpu: 0.0.40
codegen_flags: <defaults>
</compile_context>

<pallas_src>
import functools

import jax
import jax.numpy as jnp
from jax import lax
from jax.experimental import pallas as pl
from jax.experimental.pallas import tpu as pltpu


def _lstm_kernel(x_ref, wih_ref, whh_ref, b_ref, out_ref, gx_scr):
    """x_ref: [T, Nb, E] time-major block of independent sequences.
    wih_ref: [E, 4H]; whh_ref: [H, 4H]; b_ref: [1, 4H];
    out_ref: [Nb, H]; gx_scr: [T, Nb, 4H] VMEM scratch."""
    T, Nb, E = x_ref.shape
    H = out_ref.shape[1]
    G = 4 * H

    # ---- Phase 1: hoisted, time-independent input projection. ------------
    # One MXU pass over all timesteps of this block:
    #   gates_x[t, n, :] = x[t, n, :] @ W_ih^T + (b_ih + b_hh)
    # The reshapes only collapse/split the leading (sublane-tile aligned)
    # dims, so they are layout-preserving.
    x2d = x_ref[...].reshape(T * Nb, E)
    gx = jnp.dot(x2d, wih_ref[...], preferred_element_type=jnp.float32)
    gx = gx + b_ref[...]
    gx_scr[...] = gx.reshape(T, Nb, G)

    # ---- Phase 2: serial recurrence over T. -------------------------------
    whh = whh_ref[...]

    def step(t, carry):
        h, c = carry
        # Contiguous, aligned [Nb, 4H] read (time-major scratch).
        gates = gx_scr[t] + jnp.dot(h, whh, preferred_element_type=jnp.float32)
        i = jax.nn.sigmoid(gates[:, 0 * H:1 * H])
        f = jax.nn.sigmoid(gates[:, 1 * H:2 * H])
        g = jnp.tanh(gates[:, 2 * H:3 * H])
        o = jax.nn.sigmoid(gates[:, 3 * H:4 * H])
        c = f * c + i * g
        h = o * jnp.tanh(c)
        return (h, c)

    h0 = jnp.zeros((Nb, H), dtype=jnp.float32)
    c0 = jnp.zeros((Nb, H), dtype=jnp.float32)
    # Fully unroll short sequences (LLO scheduler visibility); cap the unroll
    # factor for long ones so code size / live ranges stay bounded.
    unroll = True if T <= 32 else 8
    h, _ = lax.fori_loop(0, T, step, (h0, c0), unroll=unroll)

    out_ref[...] = h.astype(out_ref.dtype)


@functools.partial(jax.jit, static_argnames=("hidden_dim",))
def lstm_classifier0_forward(embeddings, w_ih, w_hh, b_ih, b_hh, *, hidden_dim):
    """embeddings: [B, R, T, E]  ->  [B, R, hidden_dim]"""
    B, R, T, E = embeddings.shape
    H = hidden_dim
    N = B * R

    # Independent sequences split across grid blocks: megacore-parallel on
    # v7x and a bounded per-block VMEM footprint. Sublane dim of each block
    # must be a multiple of 8 (or the full extent).
    if N % 16 == 0:
        n_blocks, Nb = 2, N // 2
    else:
        n_blocks, Nb = 1, N

    # Time-major [T, N, E]: every timestep's rows are contiguous and
    # sublane-aligned for the in-kernel recurrence reads. The transpose is a
    # single tiny XLA pass over the input.
    x_tm = jnp.transpose(
        embeddings.astype(jnp.float32).reshape(N, T, E), (1, 0, 2))

    wih_t = jnp.transpose(w_ih).astype(jnp.float32)        # [E, 4H]
    whh_t = jnp.transpose(w_hh).astype(jnp.float32)        # [H, 4H]
    bias = (b_ih + b_hh).reshape(1, 4 * H).astype(jnp.float32)

    grid_spec = pltpu.PrefetchScalarGridSpec(
        num_scalar_prefetch=0,
        grid=(n_blocks,),
        in_specs=[
            pl.BlockSpec((T, Nb, E), lambda i: (0, i, 0)),
            pl.BlockSpec((E, 4 * H), lambda i: (0, 0)),
            pl.BlockSpec((H, 4 * H), lambda i: (0, 0)),
            pl.BlockSpec((1, 4 * H), lambda i: (0, 0)),
        ],
        out_specs=pl.BlockSpec((Nb, H), lambda i: (i, 0)),
        scratch_shapes=[
            pltpu.VMEM((T, Nb, 4 * H), jnp.float32),   # hoisted gates_x
        ],
    )

    out = pl.pallas_call(
        _lstm_kernel,
        out_shape=jax.ShapeDtypeStruct((N, H), jnp.float32),
        grid_spec=grid_spec,
        compiler_params=pltpu.CompilerParams(
            dimension_semantics=("parallel",),
        ),
    )(x_tm, wih_t, whh_t, bias)

    return out.reshape(B, R, H)


def _reference_forward(embeddings, w_ih, w_hh, b_ih, b_hh, hidden_dim):
    """Pure-JAX reference (lax.scan) matching PyTorch LSTM semantics."""
    B, R, T, E = embeddings.shape
    H = hidden_dim
    N = B * R
    x = jnp.transpose(embeddings.reshape(N, T, E), (1, 0, 2)).astype(jnp.float32)

    def step(carry, x_t):
        h, c = carry
        gates = x_t @ w_ih.T + h @ w_hh.T + b_ih + b_hh
        i = jax.nn.sigmoid(gates[:, 0 * H:1 * H])
        f = jax.nn.sigmoid(gates[:, 1 * H:2 * H])
        g = jnp.tanh(gates[:, 2 * H:3 * H])
        o = jax.nn.sigmoid(gates[:, 3 * H:4 * H])
        c = f * c + i * g
        h = o * jnp.tanh(c)
        return (h, c), None

    h0 = jnp.zeros((N, H), jnp.float32)
    (h, _), _ = lax.scan(step, (h0, h0), x)
    return h.reshape(B, R, H)


if __name__ == "__main__":
    # Small, module-consistent shapes.
    B = 2              # outer "for x in embeddings" loop
    max_reports = 8    # LSTM batch dim (batch_first)
    max_tokens = 8     # sequence length
    embedding_dim = 32
    hidden_dim = 32

    key = jax.random.PRNGKey(0)
    k_x, k1, k2, k3, k4 = jax.random.split(key, 5)

    embeddings = jax.random.normal(
        k_x, (B, max_reports, max_tokens, embedding_dim), dtype=jnp.float32)

    # Deterministic parameter init, PyTorch-style U(-1/sqrt(H), 1/sqrt(H)).
    bound = 1.0 / jnp.sqrt(hidden_dim)
    w_ih = jax.random.uniform(k1, (4 * hidden_dim, embedding_dim),
                              minval=-bound, maxval=bound, dtype=jnp.float32)
    w_hh = jax.random.uniform(k2, (4 * hidden_dim, hidden_dim),
                              minval=-bound, maxval=bound, dtype=jnp.float32)
    b_ih = jax.random.uniform(k3, (4 * hidden_dim,),
                              minval=-bound, maxval=bound, dtype=jnp.float32)
    b_hh = jax.random.uniform(k4, (4 * hidden_dim,),
                              minval=-bound, maxval=bound, dtype=jnp.float32)

    out = lstm_classifier0_forward(
        embeddings, w_ih, w_hh, b_ih, b_hh, hidden_dim=hidden_dim)
    out = jax.block_until_ready(out)

    ref = _reference_forward(embeddings, w_ih, w_hh, b_ih, b_hh, hidden_dim)
    assert out.shape == (B, max_reports, hidden_dim)
    assert jnp.allclose(out, ref, atol=1e-5, rtol=1e-5)

    print("KERNEL_OK")
</pallas_src>

<mosaic_0001>
module attributes {stable_mosaic.version = 11 : i64} {
  func.func @_lstm_kernel(%arg0: i32, %arg1: memref<8x8x32xf32, #tpu.memory_space<vmem>>, %arg2: memref<32x128xf32, #tpu.memory_space<vmem>>, %arg3: memref<32x128xf32, #tpu.memory_space<vmem>>, %arg4: memref<1x128xf32, #tpu.memory_space<vmem>>, %arg5: memref<8x32xf32, #tpu.memory_space<vmem>>, %arg6: memref<8x8x128xf32, #tpu.memory_space<vmem>>) attributes {dimension_semantics = [#tpu.dimension_semantics<parallel>], iteration_bounds = array<i64: 2>, scalar_prefetch = 0 : i64, scratch_operands = 1 : i64, tpu.core_type = #tpu.core_type<tc>, window_params = [{transform_indices = @transform_0, window_bounds = array<i64: 8, 8, 32>}, {pipeline_mode = #tpu.pipeline_mode<synchronous>, transform_indices = @transform_1, window_bounds = array<i64: 32, 128>}, {pipeline_mode = #tpu.pipeline_mode<synchronous>, transform_indices = @transform_2, window_bounds = array<i64: 32, 128>}, {pipeline_mode = #tpu.pipeline_mode<synchronous>, transform_indices = @transform_3, window_bounds = array<i64: 1, 128>}, {transform_indices = @transform_4, window_bounds = array<i64: 8, 32>}]} {
    %c0 = arith.constant 0 : index
    %c0_0 = arith.constant 0 : index
    %c0_1 = arith.constant 0 : index
    %0 = vector.load %arg1[%c0, %c0_0, %c0_1] : memref<8x8x32xf32, #tpu.memory_space<vmem>>, vector<8x8x32xf32>
    %1 = vector.shape_cast %0 : vector<8x8x32xf32> to vector<64x32xf32>
    %c0_2 = arith.constant 0 : index
    %c0_3 = arith.constant 0 : index
    %2 = vector.load %arg2[%c0_2, %c0_3] : memref<32x128xf32, #tpu.memory_space<vmem>>, vector<32x128xf32>
    %cst = arith.constant dense<0.000000e+00> : vector<64x128xf32>
    %3 = tpu.matmul %1, %2, %cst {dimension_numbers = #tpu.dot_dimension_numbers<[1], [0], [0], [1], [0, 0, 1, 1], [], []>} : vector<64x32xf32>, vector<32x128xf32>, vector<64x128xf32> -> vector<64x128xf32>
    %c0_4 = arith.constant 0 : index
    %c0_5 = arith.constant 0 : index
    %4 = vector.load %arg4[%c0_4, %c0_5] : memref<1x128xf32, #tpu.memory_space<vmem>>, vector<1x128xf32>
    %5 = vector.broadcast %4 : vector<1x128xf32> to vector<64x128xf32>
    %6 = arith.addf %3, %5 : vector<64x128xf32>
    %7 = vector.shape_cast %6 : vector<64x128xf32> to vector<8x8x128xf32>
    %c0_6 = arith.constant 0 : index
    %c0_7 = arith.constant 0 : index
    %c0_8 = arith.constant 0 : index
    %8 = vector.load %arg6[%c0_6, %c0_7, %c0_8] : memref<8x8x128xf32, #tpu.memory_space<vmem>>, vector<8x8x128xf32>
    tpu.vector_store %arg6[%c0_6, %c0_7, %c0_8], %7 {strides = array<i32>} : memref<8x8x128xf32, #tpu.memory_space<vmem>>, vector<8x8x128xf32>,
    %c0_9 = arith.constant 0 : index
    %c0_10 = arith.constant 0 : index
    %9 = vector.load %arg3[%c0_9, %c0_10] : memref<32x128xf32, #tpu.memory_space<vmem>>, vector<32x128xf32>
    %cst_11 = arith.constant 0.000000e+00 : f32
    %10 = vector.broadcast %cst_11 : f32 to vector<8x32xf32>
    %cst_12 = arith.constant 0.000000e+00 : f32
    %11 = vector.broadcast %cst_12 : f32 to vector<8x32xf32>
    %c0_i32 = arith.constant 0 : i32
    %12 = arith.index_cast %c0_i32 : i32 to index
    %c0_13 = arith.constant 0 : index
    %c0_14 = arith.constant 0 : index
    %13 = vector.load %arg6[%12, %c0_13, %c0_14] : memref<8x8x128xf32, #tpu.memory_space<vmem>>, vector<1x8x128xf32>
    %14 = vector.shape_cast %13 : vector<1x8x128xf32> to vector<8x128xf32>
    %cst_15 = arith.constant dense<0.000000e+00> : vector<8x128xf32>
    %15 = tpu.matmul %10, %9, %cst_15 {dimension_numbers = #tpu.dot_dimension_numbers<[1], [0], [0], [1], [0, 0, 1, 1], [], []>} : vector<8x32xf32>, vector<32x128xf32>, vector<8x128xf32> -> vector<8x128xf32>
    %16 = arith.addf %14, %15 : vector<8x128xf32>
    %17 = vector.extract_strided_slice %16 {offsets = [0, 0], sizes = [8, 32], strides = [1, 1]} : vector<8x128xf32> to vector<8x32xf32>
    %18 = arith.negf %17 : vector<8x32xf32>
    %19 = math.exp %18 : vector<8x32xf32>
    %cst_16 = arith.constant 1.000000e+00 : f32
    %20 = vector.broadcast %cst_16 : f32 to vector<8x32xf32>
    %21 = arith.addf %20, %19 : vector<8x32xf32>
    %22 = arith.divf %20, %21 : vector<8x32xf32>
    %23 = vector.extract_strided_slice %16 {offsets = [0, 32], sizes = [8, 32], strides = [1, 1]} : vector<8x128xf32> to vector<8x32xf32>
    %24 = arith.negf %23 : vector<8x32xf32>
    %25 = math.exp %24 : vector<8x32xf32>
    %cst_17 = arith.constant 1.000000e+00 : f32
    %26 = vector.broadcast %cst_17 : f32 to vector<8x32xf32>
    %27 = arith.addf %26, %25 : vector<8x32xf32>
    %28 = arith.divf %26, %27 : vector<8x32xf32>
    %29 = vector.extract_strided_slice %16 {offsets = [0, 64], sizes = [8, 32], strides = [1, 1]} : vector<8x128xf32> to vector<8x32xf32>
    %30 = math.tanh %29 : vector<8x32xf32>
    %31 = vector.extract_strided_slice %16 {offsets = [0, 96], sizes = [8, 32], strides = [1, 1]} : vector<8x128xf32> to vector<8x32xf32>
    %32 = arith.negf %31 : vector<8x32xf32>
    %33 = math.exp %32 : vector<8x32xf32>
    %cst_18 = arith.constant 1.000000e+00 : f32
    %34 = vector.broadcast %cst_18 : f32 to vector<8x32xf32>
    %35 = arith.addf %34, %33 : vector<8x32xf32>
    %36 = arith.divf %34, %35 : vector<8x32xf32>
    %37 = arith.mulf %28, %11 : vector<8x32xf32>
    %38 = arith.mulf %22, %30 : vector<8x32xf32>
    %39 = arith.addf %37, %38 : vector<8x32xf32>
    %40 = math.tanh %39 : vector<8x32xf32>
    %41 = arith.mulf %36, %40 : vector<8x32xf32>
    %c1_i32 = arith.constant 1 : i32
    %42 = arith.index_cast %c1_i32 : i32 to index
    %c0_19 = arith.constant 0 : index
    %c0_20 = arith.constant 0 : index
    %43 = vector.load %arg6[%42, %c0_19, %c0_20] : memref<8x8x128xf32, #tpu.memory_space<vmem>>, vector<1x8x128xf32>
    %44 = vector.shape_cast %43 : vector<1x8x128xf32> to vector<8x128xf32>
    %cst_21 = arith.constant dense<0.000000e+00> : vector<8x128xf32>
    %45 = tpu.matmul %41, %9, %cst_21 {dimension_numbers = #tpu.dot_dimension_numbers<[1], [0], [0], [1], [0, 0, 1, 1], [], []>} : vector<8x32xf32>, vector<32x128xf32>, vector<8x128xf32> -> vector<8x128xf32>
    %46 = arith.addf %44, %45 : vector<8x128xf32>
    %47 = vector.extract_strided_slice %46 {offsets = [0, 0], sizes = [8, 32], strides = [1, 1]} : vector<8x128xf32> to vector<8x32xf32>
    %48 = arith.negf %47 : vector<8x32xf32>
    %49 = math.exp %48 : vector<8x32xf32>
    %cst_22 = arith.constant 1.000000e+00 : f32
    %50 = vector.broadcast %cst_22 : f32 to vector<8x32xf32>
    %51 = arith.addf %50, %49 : vector<8x32xf32>
    %52 = arith.divf %50, %51 : vector<8x32xf32>
    %53 = vector.extract_strided_slice %46 {offsets = [0, 32], sizes = [8, 32], strides = [1, 1]} : vector<8x128xf32> to vector<8x32xf32>
    %54 = arith.negf %53 : vector<8x32xf32>
    %55 = math.exp %54 : vector<8x32xf32>
    %cst_23 = arith.constant 1.000000e+00 : f32
    %56 = vector.broadcast %cst_23 : f32 to vector<8x32xf32>
    %57 = arith.addf %56, %55 : vector<8x32xf32>
    %58 = arith.divf %56, %57 : vector<8x32xf32>
    %59 = vector.extract_strided_slice %46 {offsets = [0, 64], sizes = [8, 32], strides = [1, 1]} : vector<8x128xf32> to vector<8x32xf32>
    %60 = math.tanh %59 : vector<8x32xf32>
    %61 = vector.extract_strided_slice %46 {offsets = [0, 96], sizes = [8, 32], strides = [1, 1]} : vector<8x128xf32> to vector<8x32xf32>
    %62 = arith.negf %61 : vector<8x32xf32>
    %63 = math.exp %62 : vector<8x32xf32>
    %cst_24 = arith.constant 1.000000e+00 : f32
    %64 = vector.broadcast %cst_24 : f32 to vector<8x32xf32>
    %65 = arith.addf %64, %63 : vector<8x32xf32>
    %66 = arith.divf %64, %65 : vector<8x32xf32>
    %67 = arith.mulf %58, %39 : vector<8x32xf32>
    %68 = arith.mulf %52, %60 : vector<8x32xf32>
    %69 = arith.addf %67, %68 : vector<8x32xf32>
    %70 = math.tanh %69 : vector<8x32xf32>
    %71 = arith.mulf %66, %70 : vector<8x32xf32>
    %c2_i32 = arith.constant 2 : i32
    %72 = arith.index_cast %c2_i32 : i32 to index
    %c0_25 = arith.constant 0 : index
    %c0_26 = arith.constant 0 : index
    %73 = vector.load %arg6[%72, %c0_25, %c0_26] : memref<8x8x128xf32, #tpu.memory_space<vmem>>, vector<1x8x128xf32>
    %74 = vector.shape_cast %73 : vector<1x8x128xf32> to vector<8x128xf32>
    %cst_27 = arith.constant dense<0.000000e+00> : vector<8x128xf32>
    %75 = tpu.matmul %71, %9, %cst_27 {dimension_numbers = #tpu.dot_dimension_numbers<[1], [0], [0], [1], [0, 0, 1, 1], [], []>} : vector<8x32xf32>, vector<32x128xf32>, vector<8x128xf32> -> vector<8x128xf32>
    %76 = arith.addf %74, %75 : vector<8x128xf32>
    %77 = vector.extract_strided_slice %76 {offsets = [0, 0], sizes = [8, 32], strides = [1, 1]} : vector<8x128xf32> to vector<8x32xf32>
    %78 = arith.negf %77 : vector<8x32xf32>
    %79 = math.exp %78 : vector<8x32xf32>
    %cst_28 = arith.constant 1.000000e+00 : f32
    %80 = vector.broadcast %cst_28 : f32 to vector<8x32xf32>
    %81 = arith.addf %80, %79 : vector<8x32xf32>
    %82 = arith.divf %80, %81 : vector<8x32xf32>
    %83 = vector.extract_strided_slice %76 {offsets = [0, 32], sizes = [8, 32], strides = [1, 1]} : vector<8x128xf32> to vector<8x32xf32>
    %84 = arith.negf %83 : vector<8x32xf32>
    %85 = math.exp %84 : vector<8x32xf32>
    %cst_29 = arith.constant 1.000000e+00 : f32
    %86 = vector.broadcast %cst_29 : f32 to vector<8x32xf32>
    %87 = arith.addf %86, %85 : vector<8x32xf32>
    %88 = arith.divf %86, %87 : vector<8x32xf32>
    %89 = vector.extract_strided_slice %76 {offsets = [0, 64], sizes = [8, 32], strides = [1, 1]} : vector<8x128xf32> to vector<8x32xf32>
    %90 = math.tanh %89 : vector<8x32xf32>
    %91 = vector.extract_strided_slice %76 {offsets = [0, 96], sizes = [8, 32], strides = [1, 1]} : vector<8x128xf32> to vector<8x32xf32>
    %92 = arith.negf %91 : vector<8x32xf32>
    %93 = math.exp %92 : vector<8x32xf32>
    %cst_30 = arith.constant 1.000000e+00 : f32
    %94 = vector.broadcast %cst_30 : f32 to vector<8x32xf32>
    %95 = arith.addf %94, %93 : vector<8x32xf32>
    %96 = arith.divf %94, %95 : vector<8x32xf32>
    %97 = arith.mulf %88, %69 : vector<8x32xf32>
    %98 = arith.mulf %82, %90 : vector<8x32xf32>
    %99 = arith.addf %97, %98 : vector<8x32xf32>
    %100 = math.tanh %99 : vector<8x32xf32>
    %101 = arith.mulf %96, %100 : vector<8x32xf32>
    %c3_i32 = arith.constant 3 : i32
    %102 = arith.index_cast %c3_i32 : i32 to index
    %c0_31 = arith.constant 0 : index
    %c0_32 = arith.constant 0 : index
    %103 = vector.load %arg6[%102, %c0_31, %c0_32] : memref<8x8x128xf32, #tpu.memory_space<vmem>>, vector<1x8x128xf32>
    %104 = vector.shape_cast %103 : vector<1x8x128xf32> to vector<8x128xf32>
    %cst_33 = arith.constant dense<0.000000e+00> : vector<8x128xf32>
    %105 = tpu.matmul %101, %9, %cst_33 {dimension_numbers = #tpu.dot_dimension_numbers<[1], [0], [0], [1], [0, 0, 1, 1], [], []>} : vector<8x32xf32>, vector<32x128xf32>, vector<8x128xf32> -> vector<8x128xf32>
    %106 = arith.addf %104, %105 : vector<8x128xf32>
    %107 = vector.extract_strided_slice %106 {offsets = [0, 0], sizes = [8, 32], strides = [1, 1]} : vector<8x128xf32> to vector<8x32xf32>
    %108 = arith.negf %107 : vector<8x32xf32>
    %109 = math.exp %108 : vector<8x32xf32>
    %cst_34 = arith.constant 1.000000e+00 : f32
    %110 = vector.broadcast %cst_34 : f32 to vector<8x32xf32>
    %111 = arith.addf %110, %109 : vector<8x32xf32>
    %112 = arith.divf %110, %111 : vector<8x32xf32>
    %113 = vector.extract_strided_slice %106 {offsets = [0, 32], sizes = [8, 32], strides = [1, 1]} : vector<8x128xf32> to vector<8x32xf32>
    %114 = arith.negf %113 : vector<8x32xf32>
    %115 = math.exp %114 : vector<8x32xf32>
    %cst_35 = arith.constant 1.000000e+00 : f32
    %116 = vector.broadcast %cst_35 : f32 to vector<8x32xf32>
    %117 = arith.addf %116, %115 : vector<8x32xf32>
    %118 = arith.divf %116, %117 : vector<8x32xf32>
    %119 = vector.extract_strided_slice %106 {offsets = [0, 64], sizes = [8, 32], strides = [1, 1]} : vector<8x128xf32> to vector<8x32xf32>
    %120 = math.tanh %119 : vector<8x32xf32>
    %121 = vector.extract_strided_slice %106 {offsets = [0, 96], sizes = [8, 32], strides = [1, 1]} : vector<8x128xf32> to vector<8x32xf32>
    %122 = arith.negf %121 : vector<8x32xf32>
    %123 = math.exp %122 : vector<8x32xf32>
    %cst_36 = arith.constant 1.000000e+00 : f32
    %124 = vector.broadcast %cst_36 : f32 to vector<8x32xf32>
    %125 = arith.addf %124, %123 : vector<8x32xf32>
    %126 = arith.divf %124, %125 : vector<8x32xf32>
    %127 = arith.mulf %118, %99 : vector<8x32xf32>
    %128 = arith.mulf %112, %120 : vector<8x32xf32>
    %129 = arith.addf %127, %128 : vector<8x32xf32>
    %130 = math.tanh %129 : vector<8x32xf32>
    %131 = arith.mulf %126, %130 : vector<8x32xf32>
    %c4_i32 = arith.constant 4 : i32
    %132 = arith.index_cast %c4_i32 : i32 to index
    %c0_37 = arith.constant 0 : index
    %c0_38 = arith.constant 0 : index
    %133 = vector.load %arg6[%132, %c0_37, %c0_38] : memref<8x8x128xf32, #tpu.memory_space<vmem>>, vector<1x8x128xf32>
    %134 = vector.shape_cast %133 : vector<1x8x128xf32> to vector<8x128xf32>
    %cst_39 = arith.constant dense<0.000000e+00> : vector<8x128xf32>
    %135 = tpu.matmul %131, %9, %cst_39 {dimension_numbers = #tpu.dot_dimension_numbers<[1], [0], [0], [1], [0, 0, 1, 1], [], []>} : vector<8x32xf32>, vector<32x128xf32>, vector<8x128xf32> -> vector<8x128xf32>
    %136 = arith.addf %134, %135 : vector<8x128xf32>
    %137 = vector.extract_strided_slice %136 {offsets = [0, 0], sizes = [8, 32], strides = [1, 1]} : vector<8x128xf32> to vector<8x32xf32>
    %138 = arith.negf %137 : vector<8x32xf32>
    %139 = math.exp %138 : vector<8x32xf32>
    %cst_40 = arith.constant 1.000000e+00 : f32
    %140 = vector.broadcast %cst_40 : f32 to vector<8x32xf32>
    %141 = arith.addf %140, %139 : vector<8x32xf32>
    %142 = arith.divf %140, %141 : vector<8x32xf32>
    %143 = vector.extract_strided_slice %136 {offsets = [0, 32], sizes = [8, 32], strides = [1, 1]} : vector<8x128xf32> to vector<8x32xf32>
    %144 = arith.negf %143 : vector<8x32xf32>
    %145 = math.exp %144 : vector<8x32xf32>
    %cst_41 = arith.constant 1.000000e+00 : f32
    %146 = vector.broadcast %cst_41 : f32 to vector<8x32xf32>
    %147 = arith.addf %146, %145 : vector<8x32xf32>
    %148 = arith.divf %146, %147 : vector<8x32xf32>
    %149 = vector.extract_strided_slice %136 {offsets = [0, 64], sizes = [8, 32], strides = [1, 1]} : vector<8x128xf32> to vector<8x32xf32>
    %150 = math.tanh %149 : vector<8x32xf32>
    %151 = vector.extract_strided_slice %136 {offsets = [0, 96], sizes = [8, 32], strides = [1, 1]} : vector<8x128xf32> to vector<8x32xf32>
    %152 = arith.negf %151 : vector<8x32xf32>
    %153 = math.exp %152 : vector<8x32xf32>
    %cst_42 = arith.constant 1.000000e+00 : f32
    %154 = vector.broadcast %cst_42 : f32 to vector<8x32xf32>
    %155 = arith.addf %154, %153 : vector<8x32xf32>
    %156 = arith.divf %154, %155 : vector<8x32xf32>
    %157 = arith.mulf %148, %129 : vector<8x32xf32>
    %158 = arith.mulf %142, %150 : vector<8x32xf32>
    %159 = arith.addf %157, %158 : vector<8x32xf32>
    %160 = math.tanh %159 : vector<8x32xf32>
    %161 = arith.mulf %156, %160 : vector<8x32xf32>
    %c5_i32 = arith.constant 5 : i32
    %162 = arith.index_cast %c5_i32 : i32 to index
    %c0_43 = arith.constant 0 : index
    %c0_44 = arith.constant 0 : index
    %163 = vector.load %arg6[%162, %c0_43, %c0_44] : memref<8x8x128xf32, #tpu.memory_space<vmem>>, vector<1x8x128xf32>
    %164 = vector.shape_cast %163 : vector<1x8x128xf32> to vector<8x128xf32>
    %cst_45 = arith.constant dense<0.000000e+00> : vector<8x128xf32>
    %165 = tpu.matmul %161, %9, %cst_45 {dimension_numbers = #tpu.dot_dimension_numbers<[1], [0], [0], [1], [0, 0, 1, 1], [], []>} : vector<8x32xf32>, vector<32x128xf32>, vector<8x128xf32> -> vector<8x128xf32>
    %166 = arith.addf %164, %165 : vector<8x128xf32>
    %167 = vector.extract_strided_slice %166 {offsets = [0, 0], sizes = [8, 32], strides = [1, 1]} : vector<8x128xf32> to vector<8x32xf32>
    %168 = arith.negf %167 : vector<8x32xf32>
    %169 = math.exp %168 : vector<8x32xf32>
    %cst_46 = arith.constant 1.000000e+00 : f32
    %170 = vector.broadcast %cst_46 : f32 to vector<8x32xf32>
    %171 = arith.addf %170, %169 : vector<8x32xf32>
    %172 = arith.divf %170, %171 : vector<8x32xf32>
    %173 = vector.extract_strided_slice %166 {offsets = [0, 32], sizes = [8, 32], strides = [1, 1]} : vector<8x128xf32> to vector<8x32xf32>
    %174 = arith.negf %173 : vector<8x32xf32>
    %175 = math.exp %174 : vector<8x32xf32>
    %cst_47 = arith.constant 1.000000e+00 : f32
    %176 = vector.broadcast %cst_47 : f32 to vector<8x32xf32>
    %177 = arith.addf %176, %175 : vector<8x32xf32>
    %178 = arith.divf %176, %177 : vector<8x32xf32>
    %179 = vector.extract_strided_slice %166 {offsets = [0, 64], sizes = [8, 32], strides = [1, 1]} : vector<8x128xf32> to vector<8x32xf32>
    %180 = math.tanh %179 : vector<8x32xf32>
    %181 = vector.extract_strided_slice %166 {offsets = [0, 96], sizes = [8, 32], strides = [1, 1]} : vector<8x128xf32> to vector<8x32xf32>
    %182 = arith.negf %181 : vector<8x32xf32>
    %183 = math.exp %182 : vector<8x32xf32>
    %cst_48 = arith.constant 1.000000e+00 : f32
    %184 = vector.broadcast %cst_48 : f32 to vector<8x32xf32>
    %185 = arith.addf %184, %183 : vector<8x32xf32>
    %186 = arith.divf %184, %185 : vector<8x32xf32>
    %187 = arith.mulf %178, %159 : vector<8x32xf32>
    %188 = arith.mulf %172, %180 : vector<8x32xf32>
    %189 = arith.addf %187, %188 : vector<8x32xf32>
    %190 = math.tanh %189 : vector<8x32xf32>
    %191 = arith.mulf %186, %190 : vector<8x32xf32>
    %c6_i32 = arith.constant 6 : i32
    %192 = arith.index_cast %c6_i32 : i32 to index
    %c0_49 = arith.constant 0 : index
    %c0_50 = arith.constant 0 : index
    %193 = vector.load %arg6[%192, %c0_49, %c0_50] : memref<8x8x128xf32, #tpu.memory_space<vmem>>, vector<1x8x128xf32>
    %194 = vector.shape_cast %193 : vector<1x8x128xf32> to vector<8x128xf32>
    %cst_51 = arith.constant dense<0.000000e+00> : vector<8x128xf32>
    %195 = tpu.matmul %191, %9, %cst_51 {dimension_numbers = #tpu.dot_dimension_numbers<[1], [0], [0], [1], [0, 0, 1, 1], [], []>} : vector<8x32xf32>, vector<32x128xf32>, vector<8x128xf32> -> vector<8x128xf32>
    %196 = arith.addf %194, %195 : vector<8x128xf32>
    %197 = vector.extract_strided_slice %196 {offsets = [0, 0], sizes = [8, 32], strides = [1, 1]} : vector<8x128xf32> to vector<8x32xf32>
    %198 = arith.negf %197 : vector<8x32xf32>
    %199 = math.exp %198 : vector<8x32xf32>
    %cst_52 = arith.constant 1.000000e+00 : f32
    %200 = vector.broadcast %cst_52 : f32 to vector<8x32xf32>
    %201 = arith.addf %200, %199 : vector<8x32xf32>
    %202 = arith.divf %200, %201 : vector<8x32xf32>
    %203 = vector.extract_strided_slice %196 {offsets = [0, 32], sizes = [8, 32], strides = [1, 1]} : vector<8x128xf32> to vector<8x32xf32>
    %204 = arith.negf %203 : vector<8x32xf32>
    %205 = math.exp %204 : vector<8x32xf32>
    %cst_53 = arith.constant 1.000000e+00 : f32
    %206 = vector.broadcast %cst_53 : f32 to vector<8x32xf32>
    %207 = arith.addf %206, %205 : vector<8x32xf32>
    %208 = arith.divf %206, %207 : vector<8x32xf32>
    %209 = vector.extract_strided_slice %196 {offsets = [0, 64], sizes = [8, 32], strides = [1, 1]} : vector<8x128xf32> to vector<8x32xf32>
    %210 = math.tanh %209 : vector<8x32xf32>
    %211 = vector.extract_strided_slice %196 {offsets = [0, 96], sizes = [8, 32], strides = [1, 1]} : vector<8x128xf32> to vector<8x32xf32>
    %212 = arith.negf %211 : vector<8x32xf32>
    %213 = math.exp %212 : vector<8x32xf32>
    %cst_54 = arith.constant 1.000000e+00 : f32
    %214 = vector.broadcast %cst_54 : f32 to vector<8x32xf32>
    %215 = arith.addf %214, %213 : vector<8x32xf32>
    %216 = arith.divf %214, %215 : vector<8x32xf32>
    %217 = arith.mulf %208, %189 : vector<8x32xf32>
    %218 = arith.mulf %202, %210 : vector<8x32xf32>
    %219 = arith.addf %217, %218 : vector<8x32xf32>
    %220 = math.tanh %219 : vector<8x32xf32>
    %221 = arith.mulf %216, %220 : vector<8x32xf32>
    %c7_i32 = arith.constant 7 : i32
    %222 = arith.index_cast %c7_i32 : i32 to index
    %c0_55 = arith.constant 0 : index
    %c0_56 = arith.constant 0 : index
    %223 = vector.load %arg6[%222, %c0_55, %c0_56] : memref<8x8x128xf32, #tpu.memory_space<vmem>>, vector<1x8x128xf32>
    %224 = vector.shape_cast %223 : vector<1x8x128xf32> to vector<8x128xf32>
    %cst_57 = arith.constant dense<0.000000e+00> : vector<8x128xf32>
    %225 = tpu.matmul %221, %9, %cst_57 {dimension_numbers = #tpu.dot_dimension_numbers<[1], [0], [0], [1], [0, 0, 1, 1], [], []>} : vector<8x32xf32>, vector<32x128xf32>, vector<8x128xf32> -> vector<8x128xf32>
    %226 = arith.addf %224, %225 : vector<8x128xf32>
    %227 = vector.extract_strided_slice %226 {offsets = [0, 0], sizes = [8, 32], strides = [1, 1]} : vector<8x128xf32> to vector<8x32xf32>
    %228 = arith.negf %227 : vector<8x32xf32>
    %229 = math.exp %228 : vector<8x32xf32>
    %cst_58 = arith.constant 1.000000e+00 : f32
    %230 = vector.broadcast %cst_58 : f32 to vector<8x32xf32>
    %231 = arith.addf %230, %229 : vector<8x32xf32>
    %232 = arith.divf %230, %231 : vector<8x32xf32>
    %233 = vector.extract_strided_slice %226 {offsets = [0, 32], sizes = [8, 32], strides = [1, 1]} : vector<8x128xf32> to vector<8x32xf32>
    %234 = arith.negf %233 : vector<8x32xf32>
    %235 = math.exp %234 : vector<8x32xf32>
    %cst_59 = arith.constant 1.000000e+00 : f32
    %236 = vector.broadcast %cst_59 : f32 to vector<8x32xf32>
    %237 = arith.addf %236, %235 : vector<8x32xf32>
    %238 = arith.divf %236, %237 : vector<8x32xf32>
    %239 = vector.extract_strided_slice %226 {offsets = [0, 64], sizes = [8, 32], strides = [1, 1]} : vector<8x128xf32> to vector<8x32xf32>
    %240 = math.tanh %239 : vector<8x32xf32>
    %241 = vector.extract_strided_slice %226 {offsets = [0, 96], sizes = [8, 32], strides = [1, 1]} : vector<8x128xf32> to vector<8x32xf32>
    %242 = arith.negf %241 : vector<8x32xf32>
    %243 = math.exp %242 : vector<8x32xf32>
    %cst_60 = arith.constant 1.000000e+00 : f32
    %244 = vector.broadcast %cst_60 : f32 to vector<8x32xf32>
    %245 = arith.addf %244, %243 : vector<8x32xf32>
    %246 = arith.divf %244, %245 : vector<8x32xf32>
    %247 = arith.mulf %238, %219 : vector<8x32xf32>
    %248 = arith.mulf %232, %240 : vector<8x32xf32>
    %249 = arith.addf %247, %248 : vector<8x32xf32>
    %250 = math.tanh %249 : vector<8x32xf32>
    %251 = arith.mulf %246, %250 : vector<8x32xf32>
    %c8_i32 = arith.constant 8 : i32
    %c0_61 = arith.constant 0 : index
    %c0_62 = arith.constant 0 : index
    %252 = vector.load %arg5[%c0_61, %c0_62] : memref<8x32xf32, #tpu.memory_space<vmem>>, vector<8x32xf32>
    tpu.vector_store %arg5[%c0_61, %c0_62], %251 {strides = array<i32>} : memref<8x32xf32, #tpu.memory_space<vmem>>, vector<8x32xf32>,
    return
  }
  func.func @transform_0(%arg0: i32) -> (i32, i32, i32) {
    %c0_i32 = arith.constant 0 : i32
    %c0_i32_0 = arith.constant 0 : i32
    %c0_i32_1 = arith.constant 0 : i32
    return %c0_i32, %arg0, %c0_i32_0 : i32, i32, i32
  }
  func.func @transform_1(%arg0: i32) -> (i32, i32) {
    %c0_i32 = arith.constant 0 : i32
    %c0_i32_0 = arith.constant 0 : i32
    %c0_i32_1 = arith.constant 0 : i32
    return %c0_i32, %c0_i32_0 : i32, i32
  }
  func.func @transform_2(%arg0: i32) -> (i32, i32) {
    %c0_i32 = arith.constant 0 : i32
    %c0_i32_0 = arith.constant 0 : i32
    %c0_i32_1 = arith.constant 0 : i32
    return %c0_i32, %c0_i32_0 : i32, i32
  }
  func.func @transform_3(%arg0: i32) -> (i32, i32) {
    %c0_i32 = arith.constant 0 : i32
    %c0_i32_0 = arith.constant 0 : i32
    %c0_i32_1 = arith.constant 0 : i32
    return %c0_i32, %c0_i32_0 : i32, i32
  }
  func.func @transform_4(%arg0: i32) -> (i32, i32) {
    %c0_i32 = arith.constant 0 : i32
    %c0_i32_0 = arith.constant 0 : i32
    return %arg0, %c0_i32 : i32, i32
  }
}

</mosaic_0001>

<llo_original>
// kernel: lstm_classifier0_forward.1
$region0: #{lstm_classifier0_forward.1}
  #allocation0 [shape = 'u32[]', space=smem, size = 0x4, offset = 0x4, fixed_abs, tag = 'smem constant byte address 0x4 - core index']
  #allocation1 [shape = 'u32[144,128]{1,0:T(1,128)}', space=vmem, size = 0x12000, scoped, tag = 'internal scratch']
  #allocation2 [shape = 'f32[8,8,128]{2,1,0:T(8,128)}', space=vmem, size = 0x8000, scoped, tag = 'scratch operand']
  %s0 = inlined_call_operand.vmem [shape: f32[8,16,32], index: 0, kind: input, shape index: {}]
  %s1 = inlined_call_operand.vmem [shape: f32[32,128], index: 1, kind: input, shape index: {}]
  %s2 = inlined_call_operand.vmem [shape: f32[32,128], index: 2, kind: input, shape index: {}]
  %s3 = inlined_call_operand.vmem [shape: f32[1,128], index: 3, kind: input, shape index: {}]
  %s4 = inlined_call_operand.hbm [shape: f32[16,32], index: 4, kind: output, shape index: {}]
  %s5 = sld [smem:[#allocation0]]
  $region87: #{lstm_classifier0_forward.1} parent=0
    _
  %s7 = ssub.s32 1, %s5
  %s8 = scalar_select 0, %s7, %s5
  $region1: #{lstm_classifier0_forward.1} parent=0
    #allocation3 [shape = 'u8[65536]{0}', space=vmem, size = 0x10000, scoped, tag = 'input window, operand 0']
    #allocation4 [shape = 'u8[8192]{0}', space=vmem, size = 0x2000, scoped, tag = 'output window, operand 0']
    #allocation5 [shape = 's32[2]{0}', space=sflag, size = 0x8, scoped, tag = 'scoped memory for lstm_classifier0_forward.1']
    %9 = vsyncpa [#allocation5], 0
    %s10 = scalar_lea.sflag [#allocation5], 1
    %11 = vsyncpa %s10, 0
    loop: start=0, step=1, limit=4
    $region2: #{lstm_classifier0_forward.1} parent=1 // loop_pre_header
      _
    $region3: #{lstm_classifier0_forward.1} parent=1 // loop_header
      %s13 = sphi 0, %s17
      %p14 = scmp.ge.s32.totalorder %s13, 4
      %s23 = sphi 0, %s25
      %s26 = sphi 0, %s23
      %s27 = sphi 0, %s26
      %s43 = sphi 0, %s27
      %s47 = sphi 0, %s47
      %s49 = sphi 0, %s47
      %s50 = sphi 0, %s49
      %s64 = sphi 0, %s50
      %s68 = sphi 0, %s68
      %s70 = sphi 0, %s68
      %s71 = sphi 0, %s70
      %s85 = sphi 0, %s71
      %s89 = sphi 0, %s89
      %s91 = sphi 0, %s89
      %s92 = sphi 0, %s91
      %s106 = sphi 0, %s92
      %s112 = sphi 0, %s114
      %s115 = sphi 0, %s112
      %s116 = sphi 0, %s115
      %s132 = sphi 0, %s116
    $region4: #{lstm_classifier0_forward.1} parent=1 // loop_header_branch
      %16 = sbr.rel (%p14) target = $region8
    $region5: #{lstm_classifier0_forward.1} parent=1 // loop_body
      %s18 = ssub.s32 %s13, 1
      %s19 = ssub.s32 %s13, 2
      %s20 = sadd.s32 %s13, 1
      %s21 = ssub.s32 %s13, %s20
      %p22 = scmp.eq.s32.totalorder %s21, 0
      %s24 = sadd.s32 %s23, 1
      %s25 = scalar_select %p22, %s23, %s24
      %p28 = pneg %p22
      %p29 = scmp.eq.s32.totalorder %s13, 1
      %p30 = por %p28, %p29
      %p31 = scmp.ne.s32.totalorder %s23, %s26
      %p32 = scmp.eq.s32.totalorder %s13, 0
      %p33 = por %p31, %p32
      %p34 = scmp.ne.s32.totalorder %s23, %s26
      %p35 = scmp.eq.s32.totalorder %s18, 1
      %p36 = por %p34, %p35
      %p37 = scmp.ne.s32.totalorder %s26, %s27
      %p38 = scmp.eq.s32.totalorder %s18, 0
      %p39 = por %p37, %p38
      %p40 = scmp.ne.s32.totalorder %s26, %s27
      %p41 = scmp.eq.s32.totalorder %s19, 1
      %p42 = por %p40, %p41
      %p44 = scmp.ne.s32.totalorder %s27, %s43
      %p45 = scmp.eq.s32.totalorder %s19, 0
      %p46 = por %p44, %p45
      %s48 = sadd.s32 %s47, 1
      %p51 = scmp.eq.s32.totalorder %s13, 1
      %p52 = scmp.ne.s32.totalorder %s47, %s49
      %p53 = scmp.eq.s32.totalorder %s13, 0
      %p54 = por %p52, %p53
      %p55 = scmp.ne.s32.totalorder %s47, %s49
      %p56 = scmp.eq.s32.totalorder %s18, 1
      %p57 = por %p55, %p56
      %p58 = scmp.ne.s32.totalorder %s49, %s50
      %p59 = scmp.eq.s32.totalorder %s18, 0
      %p60 = por %p58, %p59
      %p61 = scmp.ne.s32.totalorder %s49, %s50
      %p62 = scmp.eq.s32.totalorder %s19, 1
      %p63 = por %p61, %p62
      %p65 = scmp.ne.s32.totalorder %s50, %s64
      %p66 = scmp.eq.s32.totalorder %s19, 0
      %p67 = por %p65, %p66
      %s69 = sadd.s32 %s68, 1
      %p72 = scmp.eq.s32.totalorder %s13, 1
      %p73 = scmp.ne.s32.totalorder %s68, %s70
      %p74 = scmp.eq.s32.totalorder %s13, 0
      %p75 = por %p73, %p74
      %p76 = scmp.ne.s32.totalorder %s68, %s70
      %p77 = scmp.eq.s32.totalorder %s18, 1
      %p78 = por %p76, %p77
      %p79 = scmp.ne.s32.totalorder %s70, %s71
      %p80 = scmp.eq.s32.totalorder %s18, 0
      %p81 = por %p79, %p80
      %p82 = scmp.ne.s32.totalorder %s70, %s71
      %p83 = scmp.eq.s32.totalorder %s19, 1
      %p84 = por %p82, %p83
      %p86 = scmp.ne.s32.totalorder %s71, %s85
      %p87 = scmp.eq.s32.totalorder %s19, 0
      %p88 = por %p86, %p87
      %s90 = sadd.s32 %s89, 1
      %p93 = scmp.eq.s32.totalorder %s13, 1
      %p94 = scmp.ne.s32.totalorder %s89, %s91
      %p95 = scmp.eq.s32.totalorder %s13, 0
      %p96 = por %p94, %p95
      %p97 = scmp.ne.s32.totalorder %s89, %s91
      %p98 = scmp.eq.s32.totalorder %s18, 1
      %p99 = por %p97, %p98
      %p100 = scmp.ne.s32.totalorder %s91, %s92
      %p101 = scmp.eq.s32.totalorder %s18, 0
      %p102 = por %p100, %p101
      %p103 = scmp.ne.s32.totalorder %s91, %s92
      %p104 = scmp.eq.s32.totalorder %s19, 1
      %p105 = por %p103, %p104
      %p107 = scmp.ne.s32.totalorder %s92, %s106
      %p108 = scmp.eq.s32.totalorder %s19, 0
      %p109 = por %p107, %p108
      %s110 = ssub.s32 %s13, %s20
      %p111 = scmp.eq.s32.totalorder %s110, 0
      %s113 = sadd.s32 %s112, 1
      %s114 = scalar_select %p111, %s112, %s113
      %p117 = pneg %p111
      %p118 = scmp.eq.s32.totalorder %s13, 1
      %p119 = por %p117, %p118
      %p120 = scmp.ne.s32.totalorder %s112, %s115
      %p121 = scmp.eq.s32.totalorder %s13, 0
      %p122 = por %p120, %p121
      %p123 = scmp.ne.s32.totalorder %s112, %s115
      %p124 = scmp.eq.s32.totalorder %s18, 1
      %p125 = por %p123, %p124
      %p126 = scmp.ne.s32.totalorder %s115, %s116
      %p127 = scmp.eq.s32.totalorder %s18, 0
      %p128 = por %p126, %p127
      %p129 = scmp.ne.s32.totalorder %s115, %s116
      %p130 = scmp.eq.s32.totalorder %s19, 1
      %p131 = por %p129, %p130
      %p133 = scmp.ne.s32.totalorder %s116, %s132
      %p134 = scmp.eq.s32.totalorder %s19, 0
      %p135 = por %p133, %p134
      %p136 = scmp.le.s32.totalorder 1, %s13
      %p137 = scmp.lt.s32.totalorder %s13, 3
      %p138 = pnand %p136, %p137
      %p139 = pneg %p138
      // Predicated region
      $region9: #{lstm_classifier0_forward.1} parent=5 // pred_check
        _
      $region10: #{lstm_classifier0_forward.1} parent=5 // pred_check_branch
        %141 = sbr.rel (%p138) target = $region12
      $region11: #{lstm_classifier0_forward.1} parent=5 // pred_region
        %s142 = ssub.s32 %s13, 1
        // Predicated region
        $region13: #{lstm_classifier0_forward.1} parent=11 // pred_check
          %p143 = pneg %p60
        $region14: #{lstm_classifier0_forward.1} parent=11 // pred_check_branch
          %145 = sbr.rel (%p143) target = $region16
        $region15: #{lstm_classifier0_forward.1} parent=11 // pred_region
          _
        $region16: #{lstm_classifier0_forward.1} parent=11 // pred_fallthru
          _
        // Predicated region
        $region17: #{lstm_classifier0_forward.1} parent=11 // pred_check
          %p146 = pneg %p81
        $region18: #{lstm_classifier0_forward.1} parent=11 // pred_check_branch
          %148 = sbr.rel (%p146) target = $region20
        $region19: #{lstm_classifier0_forward.1} parent=11 // pred_region
          _
        $region20: #{lstm_classifier0_forward.1} parent=11 // pred_fallthru
          _
        // Predicated region
        $region21: #{lstm_classifier0_forward.1} parent=11 // pred_check
          %p149 = pneg %p102
        $region22: #{lstm_classifier0_forward.1} parent=11 // pred_check_branch
          %151 = sbr.rel (%p149) target = $region24
        $region23: #{lstm_classifier0_forward.1} parent=11 // pred_region
          _
        $region24: #{lstm_classifier0_forward.1} parent=11 // pred_fallthru
          _
      $region12: #{lstm_classifier0_forward.1} parent=5 // pred_fallthru
        _
      %p152 = scmp.lt.s32.totalorder %s13, 2
      // Predicated region
      $region25: #{lstm_classifier0_forward.1} parent=5 // pred_check
        %p153 = pneg %p152
      $region26: #{lstm_classifier0_forward.1} parent=5 // pred_check_branch
        %155 = sbr.rel (%p153) target = $region28
      $region27: #{lstm_classifier0_forward.1} parent=5 // pred_region
        // Predicated region
        $region29: #{lstm_classifier0_forward.1} parent=27 // pred_check
          %p156 = pneg %p33
        $region30: #{lstm_classifier0_forward.1} parent=27 // pred_check_branch
          %158 = sbr.rel (%p156) target = $region32
        $region31: #{lstm_classifier0_forward.1} parent=27 // pred_region
          %s159 = sand.u32 %s23, 1
          %s160 = sand.u32 %s23, 1
          %s161 = smul.addr %s160, 64
          %s162 = scalar_lea.vmem [#allocation3], %s161
          %s163 = smul.addr %s13, 8
          %s164 = scalar_lea.vmem %s0, %s163
          // Predicated region
          $region33: #{lstm_classifier0_forward.1} parent=31 // pred_check
            _
          $region34: #{lstm_classifier0_forward.1} parent=31 // pred_check_branch
            %166 = sbr.rel (0) target = $region36
          $region35: #{lstm_classifier0_forward.1} parent=31 // pred_region
            // Predicated region
            $region37: #{lstm_classifier0_forward.1} parent=35 // pred_check
              _
            $region38: #{lstm_classifier0_forward.1} parent=35 // pred_check_branch
              %168 = sbr.rel (0) target = $region40
            $region39: #{lstm_classifier0_forward.1} parent=35 // pred_region
              // Predicated region
              $region52: #{lstm_classifier0_forward.1} parent=39 // pred_check
                _
              $region53: #{lstm_classifier0_forward.1} parent=39 // pred_check_branch
                %198 = sbr.rel (0) target = $region55
              $region54: #{lstm_classifier0_forward.1} parent=39 // pred_region
                loop: start=0, step=1, limit=1
                $region56: #{lstm_classifier0_forward.1} parent=54 // loop_pre_header
                  _
                $region57: #{lstm_classifier0_forward.1} parent=54 // loop_header
                  %s200 = sphi 0, %s204
                  %p201 = scmp.ge.s32.totalorder %s200, 1
                  %s205 = sphi %s164, %s164
                  %s206 = sphi %s162, %s162
                $region58: #{lstm_classifier0_forward.1} parent=54 // loop_header_branch
                  %203 = sbr.rel (%p201) target = $region62
                $region59: #{lstm_classifier0_forward.1} parent=54 // loop_body
                  %v207 = vld [vmem:[%s205] sm:$0xff]
                  %208 = vst [vmem:[%s206] sm:$0xff] %v207
                  %v209 = vld [vmem:[%s205 + $0x10] sm:$0xff]
                  %210 = vst [vmem:[%s206 + $0x8] sm:$0xff] %v209
                  %v211 = vld [vmem:[%s205 + $0x20] sm:$0xff]
                  %212 = vst [vmem:[%s206 + $0x10] sm:$0xff] %v211
                  %v213 = vld [vmem:[%s205 + $0x30] sm:$0xff]
                  %214 = vst [vmem:[%s206 + $0x18] sm:$0xff] %v213
                  %v215 = vld [vmem:[%s205 + $0x40] sm:$0xff]
                  %216 = vst [vmem:[%s206 + $0x20] sm:$0xff] %v215
                  %v217 = vld [vmem:[%s205 + $0x50] sm:$0xff]
                  %218 = vst [vmem:[%s206 + $0x28] sm:$0xff] %v217
                  %v219 = vld [vmem:[%s205 + $0x60] sm:$0xff]
                  %220 = vst [vmem:[%s206 + $0x30] sm:$0xff] %v219
                  %v221 = vld [vmem:[%s205 + $0x70] sm:$0xff]
                  %222 = vst [vmem:[%s206 + $0x38] sm:$0xff] %v221
                $region60: #{lstm_classifier0_forward.1} parent=54 // loop_footer
                  %s204 = sadd.s32 1, %s200
                $region61: #{lstm_classifier0_forward.1} parent=54 // loop_footer_branch
                  %199 = sbr.rel target = $region57
                $region62: #{lstm_classifier0_forward.1} parent=54 // loop_exit
                  _
              $region55: #{lstm_classifier0_forward.1} parent=39 // pred_fallthru
                _
              // Predicated region
              $region63: #{lstm_classifier0_forward.1} parent=39 // pred_check
                _
              $region64: #{lstm_classifier0_forward.1} parent=39 // pred_check_branch
                %224 = sbr.rel target = $region66
              $region65: #{lstm_classifier0_forward.1} parent=39 // pred_region
                _
              $region66: #{lstm_classifier0_forward.1} parent=39 // pred_fallthru
                _
            $region40: #{lstm_classifier0_forward.1} parent=35 // pred_fallthru
              _
            // Predicated region
            $region41: #{lstm_classifier0_forward.1} parent=35 // pred_check
              _
            $region42: #{lstm_classifier0_forward.1} parent=35 // pred_check_branch
              %170 = sbr.rel target = $region44
            $region43: #{lstm_classifier0_forward.1} parent=35 // pred_region
              %s172 = ssub.s32 256, 1
              loop: start=0, step=1, limit=1
              $region45: #{lstm_classifier0_forward.1} parent=43 // loop_pre_header
                _
              $region46: #{lstm_classifier0_forward.1} parent=43 // loop_header
                %s174 = sphi 0, %s178
                %p175 = scmp.ge.s32.totalorder %s174, 1
                %s179 = sphi %s164, %s164
                %s180 = sphi %s162, %s162
              $region47: #{lstm_classifier0_forward.1} parent=43 // loop_header_branch
                %177 = sbr.rel (%p175) target = $region51
              $region48: #{lstm_classifier0_forward.1} parent=43 // loop_body
                %v181 = vld [vmem:[%s179] sm:%s172]
                %182 = vst [vmem:[%s180] sm:%s172] %v181
                %v183 = vld [vmem:[%s179 + $0x10] sm:%s172]
                %184 = vst [vmem:[%s180 + $0x8] sm:%s172] %v183
                %v185 = vld [vmem:[%s179 + $0x20] sm:%s172]
                %186 = vst [vmem:[%s180 + $0x10] sm:%s172] %v185
                %v187 = vld [vmem:[%s179 + $0x30] sm:%s172]
                %188 = vst [vmem:[%s180 + $0x18] sm:%s172] %v187
                %v189 = vld [vmem:[%s179 + $0x40] sm:%s172]
                %190 = vst [vmem:[%s180 + $0x20] sm:%s172] %v189
                %v191 = vld [vmem:[%s179 + $0x50] sm:%s172]
                %192 = vst [vmem:[%s180 + $0x28] sm:%s172] %v191
                %v193 = vld [vmem:[%s179 + $0x60] sm:%s172]
                %194 = vst [vmem:[%s180 + $0x30] sm:%s172] %v193
                %v195 = vld [vmem:[%s179 + $0x70] sm:%s172]
                %196 = vst [vmem:[%s180 + $0x38] sm:%s172] %v195
              $region49: #{lstm_classifier0_forward.1} parent=43 // loop_footer
                %s178 = sadd.s32 1, %s174
              $region50: #{lstm_classifier0_forward.1} parent=43 // loop_footer_branch
                %173 = sbr.rel target = $region46
              $region51: #{lstm_classifier0_forward.1} parent=43 // loop_exit
                _
            $region44: #{lstm_classifier0_forward.1} parent=35 // pred_fallthru
              _
          $region36: #{lstm_classifier0_forward.1} parent=31 // pred_fallthru
            _
          %225 = vnop
        $region32: #{lstm_classifier0_forward.1} parent=27 // pred_fallthru
          _
      $region28: #{lstm_classifier0_forward.1} parent=5 // pred_fallthru
        _
      %p226 = scmp.le.s32.totalorder 1, %s13
      %p227 = scmp.lt.s32.totalorder %s13, 3
      %p228 = pnand %p226, %p227
      %p229 = pneg %p228
      // Predicated region
      $region67: #{lstm_classifier0_forward.1} parent=5 // pred_check
        _
      $region68: #{lstm_classifier0_forward.1} parent=5 // pred_check_branch
        %231 = sbr.rel (%p228) target = $region70
      $region69: #{lstm_classifier0_forward.1} parent=5 // pred_region
        %s232 = ssub.s32 %s13, 1
        %s233 = sand.u32 %s26, 1
        %s234 = sand.u32 %s26, 1
        %s235 = smul.addr %s234, 64
        %s236 = scalar_lea.vmem [#allocation3], %s235
        // Predicated region
        $region71: #{lstm_classifier0_forward.1} parent=69 // pred_check
          %p237 = pneg %p39
        $region72: #{lstm_classifier0_forward.1} parent=69 // pred_check_branch
          %239 = sbr.rel (%p237) target = $region74
        $region73: #{lstm_classifier0_forward.1} parent=69 // pred_region
          _
        $region74: #{lstm_classifier0_forward.1} parent=69 // pred_fallthru
          _
        %s240 = sand.u32 %s26, 1
        %s241 = sand.u32 %s26, 1
        %s242 = smul.addr %s241, 64
        %s243 = scalar_lea.vmem [#allocation3], %s242
        %p244 = pneg %p39
        %p245 = pneg %p36
        %p246 = pneg %p60
        %p247 = pneg %p57
        %p248 = pneg %p81
        %p249 = pneg %p78
        %p250 = pneg %p102
        %p251 = pneg %p99
        %p252 = pneg %p128
        %p253 = pneg %p125
        %s254 = sand.u32 %s115, 1
        %s255 = scalar_lea.sflag [#allocation5], %s254
        %s256 = sand.u32 %s115, 1
        %s257 = smul.addr %s256, 8
        %s258 = scalar_lea.vmem [#allocation4], %s257
        %v259 = vld [vmem:[%s236] sm:$0xff]
        %v260 = vld [vmem:[%s236 + $0x8] sm:$0xff]
        %v261 = vld [vmem:[%s236 + $0x10] sm:$0xff]
        %v262 = vld [vmem:[%s236 + $0x18] sm:$0xff]
        %v263 = vld [vmem:[%s236 + $0x20] sm:$0xff]
        %v264 = vld [vmem:[%s236 + $0x28] sm:$0xff]
        %v265 = vld [vmem:[%s236 + $0x30] sm:$0xff]
        %v266 = vld [vmem:[%s236 + $0x38] sm:$0xff]
        %v267 = vld [vmem:[%s1] sm:$0xff]
        %v268 = vld [vmem:[%s1 + $0x8] sm:$0xff]
        %v269 = vld [vmem:[%s1 + $0x10] sm:$0xff]
        %v270 = vld [vmem:[%s1 + $0x18] sm:$0xff]
        %v271 = vld [vmem:[%s3] sm:$0x1]
        %v273 = vlaneseq
        %v274 = vshrl.u32 %v273, 7
        %v275 = vsub.s32 0, %v274
        %v276 = vrot.slane %v271, %v275
        %vm278 = vcmask 261120
        %v280 = vsel %vm278, %v259, 0
        %v283 = vsel %vm278, %v260, 0
        %v286 = vsel %vm278, %v261, 0
        %v289 = vsel %vm278, %v262, 0
        %v292 = vsel %vm278, %v263, 0
        %v295 = vsel %vm278, %v264, 0
        %v298 = vsel %vm278, %v265, 0
        %v301 = vsel %vm278, %v266, 0
        %303 = vmatprep.subr.mxu0 0.0
        %304 = vmatpush1.msra.mxu0 0.0
        %305 = vmatprep.subr.mxu0 0.0
        %306 = vmatpush1.msra.mxu0 0.0
        %307 = vmatprep.subr.mxu0 0.0
        %308 = vmatpush1.msra.mxu0 0.0
        %309 = vmatprep.subr.mxu0 0.0
        %310 = vmatpush1.msra.mxu0 0.0
        %311 = vmatprep.subr.mxu0 0.0
        %312 = vmatpush1.msra.mxu0 0.0
        %313 = vmatprep.subr.mxu0 0.0
        %314 = vmatpush1.msra.mxu0 0.0
        %315 = vmatprep.subr.mxu0 0.0
        %316 = vmatpush1.msra.mxu0 0.0
        %317 = vmatprep.subr.mxu0 0.0
        %318 = vmatpush1.msra.mxu0 0.0
        %319 = vmatprep.subr.mxu0 0.0
        %320 = vmatpush1.msra.mxu0 0.0
        %321 = vmatprep.subr.mxu0 0.0
        %322 = vmatpush1.msra.mxu0 0.0
        %323 = vmatprep.subr.mxu0 0.0
        %324 = vmatpush1.msra.mxu0 0.0
        %325 = vmatprep.subr.mxu0 0.0
        %326 = vmatpush1.msra.mxu0 0.0
        %327 = vmatprep.subr.mxu0 0.0
        %328 = vmatpush1.msra.mxu0 %v270
        %329 = vmatprep.subr.mxu0 0.0
        %330 = vmatpush1.msra.mxu0 %v269
        %331 = vmatprep.subr.mxu0 0.0
        %332 = vmatpush1.msra.mxu0 %v268
        %333 = vmatprep.subr.mxu0 0.0
        %334 = vmatpush1.msra.mxu0 %v267
        %335 = vmatprep.subr.mxu0 0.0
        %336 = vmatpush2.msra.mxu0 0.0
        %337 = vmatprep.subr.mxu0 0.0
        %338 = vmatpush2.msra.mxu0 0.0
        %339 = vmatprep.subr.mxu0 0.0
        %340 = vmatpush2.msra.mxu0 0.0
        %341 = vmatprep.subr.mxu0 0.0
        %342 = vmatpush2.msra.mxu0 0.0
        %343 = vmatprep.subr.mxu0 0.0
        %344 = vmatpush2.msra.mxu0 0.0
        %345 = vmatprep.subr.mxu0 0.0
        %346 = vmatpush2.msra.mxu0 0.0
        %347 = vmatprep.subr.mxu0 0.0
        %348 = vmatpush2.msra.mxu0 0.0
        %349 = vmatprep.subr.mxu0 0.0
        %350 = vmatpush2.msra.mxu0 0.0
        %351 = vmatprep.subr.mxu0 0.0
        %352 = vmatpush2.msra.mxu0 0.0
        %353 = vmatprep.subr.mxu0 0.0
        %354 = vmatpush2.msra.mxu0 0.0
        %355 = vmatprep.subr.mxu0 0.0
        %356 = vmatpush2.msra.mxu0 0.0
        %357 = vmatprep.subr.mxu0 0.0
        %358 = vmatpush2.msra.mxu0 0.0
        %359 = vmatprep.subr.mxu0 0.0
        %360 = vmatpush2.msra.mxu0 0.0
        %361 = vmatprep.subr.mxu0 0.0
        %362 = vmatpush2.msra.mxu0 0.0
        %363 = vmatprep.subr.mxu0 0.0
        %364 = vmatpush2.msra.mxu0 0.0
        %365 = vmatprep.subr.mxu0 0.0
        %366 = vmatpush2.msra.mxu0 0.0
        %367 = vmatprep.mubr.f32.mxu0 0.0
        %368 = vmatmul.mubr.f32.gmra.mxu0 %v280
        %v369 = vpop.f32.mrf.mxu0
        %v370 = vadd.f32 %v276, %v369
        %v371 = vpop.f32.mrf.mxu0
        %372 = vmatprep.mubr.f32.mxu0 0.0
        %373 = vmatmul.mubr.f32.gmra.mxu0 %v283
        %v374 = vpop.f32.mrf.mxu0
        %v375 = vadd.f32 %v276, %v374
        %v376 = vpop.f32.mrf.mxu0
        %377 = vmatprep.mubr.f32.mxu0 0.0
        %378 = vmatmul.mubr.f32.gmra.mxu0 %v286
        %v379 = vpop.f32.mrf.mxu0
        %v380 = vadd.f32 %v276, %v379
        %v381 = vpop.f32.mrf.mxu0
        %382 = vmatprep.mubr.f32.mxu0 0.0
        %383 = vmatmul.mubr.f32.gmra.mxu0 %v289
        %v384 = vpop.f32.mrf.mxu0
        %v385 = vadd.f32 %v276, %v384
        %v386 = vpop.f32.mrf.mxu0
        %387 = vmatprep.mubr.f32.mxu0 0.0
        %388 = vmatmul.mubr.f32.gmra.mxu0 %v292
        %v389 = vpop.f32.mrf.mxu0
        %v390 = vadd.f32 %v276, %v389
        %v391 = vpop.f32.mrf.mxu0
        %392 = vmatprep.mubr.f32.mxu0 0.0
        %393 = vmatmul.mubr.f32.gmra.mxu0 %v295
        %v394 = vpop.f32.mrf.mxu0
        %v395 = vadd.f32 %v276, %v394
        %v396 = vpop.f32.mrf.mxu0
        %397 = vmatprep.mubr.f32.mxu0 0.0
        %398 = vmatmul.mubr.f32.gmra.mxu0 %v298
        %v399 = vpop.f32.mrf.mxu0
        %v400 = vadd.f32 %v276, %v399
        %v401 = vpop.f32.mrf.mxu0
        %402 = vmatprep.mubr.f32.mxu0 0.0
        %403 = vmatmul.mubr.f32.gmra.mxu0 %v301
        %v404 = vpop.f32.mrf.mxu0
        %v405 = vadd.f32 %v276, %v404
        %v406 = vpop.f32.mrf.mxu0
        %407 = vdwg.mxu0
        %408 = vst [vmem:[#allocation2] sm:$0xff] %v370
        %409 = vst [vmem:[#allocation2 + $0x8] sm:$0xff] %v375
        %410 = vst [vmem:[#allocation2 + $0x10] sm:$0xff] %v380
        %411 = vst [vmem:[#allocation2 + $0x18] sm:$0xff] %v385
        %412 = vst [vmem:[#allocation2 + $0x20] sm:$0xff] %v390
        %413 = vst [vmem:[#allocation2 + $0x28] sm:$0xff] %v395
        %414 = vst [vmem:[#allocation2 + $0x30] sm:$0xff] %v400
        %415 = vst [vmem:[#allocation2 + $0x38] sm:$0xff] %v405
        %v416 = vld [vmem:[%s2] sm:$0xff]
        %v417 = vld [vmem:[%s2 + $0x8] sm:$0xff]
        %v418 = vld [vmem:[%s2 + $0x10] sm:$0xff]
        %v419 = vld [vmem:[%s2 + $0x18] sm:$0xff]
        %v420 = vld [vmem:[#allocation2] sm:$0xff]
        %v422 = vsel %vm278, 0.0, 0
        %424 = vmatprep.subr.mxu0 0.0
        %425 = vmatpush1.msra.mxu0 0.0
        %426 = vmatprep.subr.mxu0 0.0
        %427 = vmatpush1.msra.mxu0 0.0
        %428 = vmatprep.subr.mxu0 0.0
        %429 = vmatpush1.msra.mxu0 0.0
        %430 = vmatprep.subr.mxu0 0.0
        %431 = vmatpush1.msra.mxu0 0.0
        %432 = vmatprep.subr.mxu0 0.0
        %433 = vmatpush1.msra.mxu0 0.0
        %434 = vmatprep.subr.mxu0 0.0
        %435 = vmatpush1.msra.mxu0 0.0
        %436 = vmatprep.subr.mxu0 0.0
        %437 = vmatpush1.msra.mxu0 0.0
        %438 = vmatprep.subr.mxu0 0.0
        %439 = vmatpush1.msra.mxu0 0.0
        %440 = vmatprep.subr.mxu0 0.0
        %441 = vmatpush1.msra.mxu0 0.0
        %442 = vmatprep.subr.mxu0 0.0
        %443 = vmatpush1.msra.mxu0 0.0
        %444 = vmatprep.subr.mxu0 0.0
        %445 = vmatpush1.msra.mxu0 0.0
        %446 = vmatprep.subr.mxu0 0.0
        %447 = vmatpush1.msra.mxu0 0.0
        %448 = vmatprep.subr.mxu0 0.0
        %449 = vmatpush1.msra.mxu0 %v419
        %450 = vmatprep.subr.mxu0 0.0
        %451 = vmatpush1.msra.mxu0 %v418
        %452 = vmatprep.subr.mxu0 0.0
        %453 = vmatpush1.msra.mxu0 %v417
        %454 = vmatprep.subr.mxu0 0.0
        %455 = vmatpush1.msra.mxu0 %v416
        %456 = vmatprep.subr.mxu0 0.0
        %457 = vmatpush2.msra.mxu0 0.0
        %458 = vmatprep.subr.mxu0 0.0
        %459 = vmatpush2.msra.mxu0 0.0
        %460 = vmatprep.subr.mxu0 0.0
        %461 = vmatpush2.msra.mxu0 0.0
        %462 = vmatprep.subr.mxu0 0.0
        %463 = vmatpush2.msra.mxu0 0.0
        %464 = vmatprep.subr.mxu0 0.0
        %465 = vmatpush2.msra.mxu0 0.0
        %466 = vmatprep.subr.mxu0 0.0
        %467 = vmatpush2.msra.mxu0 0.0
        %468 = vmatprep.subr.mxu0 0.0
        %469 = vmatpush2.msra.mxu0 0.0
        %470 = vmatprep.subr.mxu0 0.0
        %471 = vmatpush2.msra.mxu0 0.0
        %472 = vmatprep.subr.mxu0 0.0
        %473 = vmatpush2.msra.mxu0 0.0
        %474 = vmatprep.subr.mxu0 0.0
        %475 = vmatpush2.msra.mxu0 0.0
        %476 = vmatprep.subr.mxu0 0.0
        %477 = vmatpush2.msra.mxu0 0.0
        %478 = vmatprep.subr.mxu0 0.0
        %479 = vmatpush2.msra.mxu0 0.0
        %480 = vmatprep.subr.mxu0 0.0
        %481 = vmatpush2.msra.mxu0 0.0
        %482 = vmatprep.subr.mxu0 0.0
        %483 = vmatpush2.msra.mxu0 0.0
        %484 = vmatprep.subr.mxu0 0.0
        %485 = vmatpush2.msra.mxu0 0.0
        %486 = vmatprep.subr.mxu0 0.0
        %487 = vmatpush2.msra.mxu0 0.0
        %488 = vmatprep.mubr.f32.mxu0 0.0
        %489 = vmatmul.mubr.f32.gmra.mxu0 %v422
        %v490 = vpop.f32.mrf.mxu0
        %v491 = vadd.f32 0.0, %v490
        %v492 = vpop.f32.mrf.mxu0
        %493 = vdwg.mxu0
        %v494 = vadd.f32 %v420, %v491
        %v495 = vxor.u32 %v494, 2147483648
        %v496 = vmul.f32 %v495, 1.442695
        %v497 = vpow.pop %v496
        %v498 = vadd.f32 %v497, 1.0
        %v499 = vrcp.pop %v498
        %v500 = vmul.f32 1.0, %v499
        %v501 = vtanh.pop %v494
        %v502 = vmul.f32 %v500, 0.0
        %504 = vrot.lane.b32.xlu0 %v501, 64
        %v505 = vpop.permute.xlu0 %504
        %v507 = vmul.f32 %v500, %v505
        %509 = vrot.lane.b32.xlu0 %v507, 32
        %v510 = vpop.permute.xlu0 %509
        %v512 = vadd.f32 %v502, %v510
        %v513 = vtanh.pop %v512
        %515 = vrot.lane.b32.xlu0 %v513, 64
        %v516 = vpop.permute.xlu0 %515
        %v518 = vmul.f32 %v500, %v516
        %s519 = scalar_lea.vmem [#allocation2], 8
        %v520 = vld [vmem:[%s519] sm:$0xff]
        %522 = vrot.lane.b32.xlu0 %v518, 32
        %v523 = vpop.permute.xlu0 %522
        %v524 = vsel %vm278, %v523, 0
        %526 = vmatprep.subr.mxu0 0.0
        %527 = vmatpush1.msra.mxu0 0.0
        %528 = vmatprep.subr.mxu0 0.0
        %529 = vmatpush1.msra.mxu0 0.0
        %530 = vmatprep.subr.mxu0 0.0
        %531 = vmatpush1.msra.mxu0 0.0
        %532 = vmatprep.subr.mxu0 0.0
        %533 = vmatpush1.msra.mxu0 0.0
        %534 = vmatprep.subr.mxu0 0.0
        %535 = vmatpush1.msra.mxu0 0.0
        %536 = vmatprep.subr.mxu0 0.0
        %537 = vmatpush1.msra.mxu0 0.0
        %538 = vmatprep.subr.mxu0 0.0
        %539 = vmatpush1.msra.mxu0 0.0
        %540 = vmatprep.subr.mxu0 0.0
        %541 = vmatpush1.msra.mxu0 0.0
        %542 = vmatprep.subr.mxu0 0.0
        %543 = vmatpush1.msra.mxu0 0.0
        %544 = vmatprep.subr.mxu0 0.0
        %545 = vmatpush1.msra.mxu0 0.0
        %546 = vmatprep.subr.mxu0 0.0
        %547 = vmatpush1.msra.mxu0 0.0
        %548 = vmatprep.subr.mxu0 0.0
        %549 = vmatpush1.msra.mxu0 0.0
        %550 = vmatprep.subr.mxu0 0.0
        %551 = vmatpush1.msra.mxu0 %v419
        %552 = vmatprep.subr.mxu0 0.0
        %553 = vmatpush1.msra.mxu0 %v418
        %554 = vmatprep.subr.mxu0 0.0
        %555 = vmatpush1.msra.mxu0 %v417
        %556 = vmatprep.subr.mxu0 0.0
        %557 = vmatpush1.msra.mxu0 %v416
        %558 = vmatprep.subr.mxu0 0.0
        %559 = vmatpush2.msra.mxu0 0.0
        %560 = vmatprep.subr.mxu0 0.0
        %561 = vmatpush2.msra.mxu0 0.0
        %562 = vmatprep.subr.mxu0 0.0
        %563 = vmatpush2.msra.mxu0 0.0
        %564 = vmatprep.subr.mxu0 0.0
        %565 = vmatpush2.msra.mxu0 0.0
        %566 = vmatprep.subr.mxu0 0.0
        %567 = vmatpush2.msra.mxu0 0.0
        %568 = vmatprep.subr.mxu0 0.0
        %569 = vmatpush2.msra.mxu0 0.0
        %570 = vmatprep.subr.mxu0 0.0
        %571 = vmatpush2.msra.mxu0 0.0
        %572 = vmatprep.subr.mxu0 0.0
        %573 = vmatpush2.msra.mxu0 0.0
        %574 = vmatprep.subr.mxu0 0.0
        %575 = vmatpush2.msra.mxu0 0.0
        %576 = vmatprep.subr.mxu0 0.0
        %577 = vmatpush2.msra.mxu0 0.0
        %578 = vmatprep.subr.mxu0 0.0
        %579 = vmatpush2.msra.mxu0 0.0
        %580 = vmatprep.subr.mxu0 0.0
        %581 = vmatpush2.msra.mxu0 0.0
        %582 = vmatprep.subr.mxu0 0.0
        %583 = vmatpush2.msra.mxu0 0.0
        %584 = vmatprep.subr.mxu0 0.0
        %585 = vmatpush2.msra.mxu0 0.0
        %586 = vmatprep.subr.mxu0 0.0
        %587 = vmatpush2.msra.mxu0 0.0
        %588 = vmatprep.subr.mxu0 0.0
        %589 = vmatpush2.msra.mxu0 0.0
        %590 = vmatprep.mubr.f32.mxu0 0.0
        %591 = vmatmul.mubr.f32.gmra.mxu0 %v524
        %v592 = vpop.f32.mrf.mxu0
        %v593 = vadd.f32 0.0, %v592
        %v594 = vpop.f32.mrf.mxu0
        %595 = vdwg.mxu0
        %v596 = vadd.f32 %v520, %v593
        %v597 = vxor.u32 %v596, 2147483648
        %v598 = vmul.f32 %v597, 1.442695
        %v599 = vpow.pop %v598
        %v600 = vadd.f32 %v599, 1.0
        %v601 = vrcp.pop %v600
        %v602 = vmul.f32 1.0, %v601
        %v603 = vtanh.pop %v596
        %v604 = vmul.f32 %v602, %v512
        %606 = vrot.lane.b32.xlu0 %v603, 64
        %v607 = vpop.permute.xlu0 %606
        %v609 = vmul.f32 %v602, %v607
        %611 = vrot.lane.b32.xlu0 %v609, 32
        %v612 = vpop.permute.xlu0 %611
        %v614 = vadd.f32 %v604, %v612
        %v615 = vtanh.pop %v614
        %617 = vrot.lane.b32.xlu0 %v615, 64
        %v618 = vpop.permute.xlu0 %617
        %v620 = vmul.f32 %v602, %v618
        %s621 = scalar_lea.vmem [#allocation2], 16
        %v622 = vld [vmem:[%s621] sm:$0xff]
        %624 = vrot.lane.b32.xlu0 %v620, 32
        %v625 = vpop.permute.xlu0 %624
        %v626 = vsel %vm278, %v625, 0
        %628 = vmatprep.subr.mxu0 0.0
        %629 = vmatpush1.msra.mxu0 0.0
        %630 = vmatprep.subr.mxu0 0.0
        %631 = vmatpush1.msra.mxu0 0.0
        %632 = vmatprep.subr.mxu0 0.0
        %633 = vmatpush1.msra.mxu0 0.0
        %634 = vmatprep.subr.mxu0 0.0
        %635 = vmatpush1.msra.mxu0 0.0
        %636 = vmatprep.subr.mxu0 0.0
        %637 = vmatpush1.msra.mxu0 0.0
        %638 = vmatprep.subr.mxu0 0.0
        %639 = vmatpush1.msra.mxu0 0.0
        %640 = vmatprep.subr.mxu0 0.0
        %641 = vmatpush1.msra.mxu0 0.0
        %642 = vmatprep.subr.mxu0 0.0
        %643 = vmatpush1.msra.mxu0 0.0
        %644 = vmatprep.subr.mxu0 0.0
        %645 = vmatpush1.msra.mxu0 0.0
        %646 = vmatprep.subr.mxu0 0.0
        %647 = vmatpush1.msra.mxu0 0.0
        %648 = vmatprep.subr.mxu0 0.0
        %649 = vmatpush1.msra.mxu0 0.0
        %650 = vmatprep.subr.mxu0 0.0
        %651 = vmatpush1.msra.mxu0 0.0
        %652 = vmatprep.subr.mxu0 0.0
        %653 = vmatpush1.msra.mxu0 %v419
        %654 = vmatprep.subr.mxu0 0.0
        %655 = vmatpush1.msra.mxu0 %v418
        %656 = vmatprep.subr.mxu0 0.0
        %657 = vmatpush1.msra.mxu0 %v417
        %658 = vmatprep.subr.mxu0 0.0
        %659 = vmatpush1.msra.mxu0 %v416
        %660 = vmatprep.subr.mxu0 0.0
        %661 = vmatpush2.msra.mxu0 0.0
        %662 = vmatprep.subr.mxu0 0.0
        %663 = vmatpush2.msra.mxu0 0.0
        %664 = vmatprep.subr.mxu0 0.0
        %665 = vmatpush2.msra.mxu0 0.0
        %666 = vmatprep.subr.mxu0 0.0
        %667 = vmatpush2.msra.mxu0 0.0
        %668 = vmatprep.subr.mxu0 0.0
        %669 = vmatpush2.msra.mxu0 0.0
        %670 = vmatprep.subr.mxu0 0.0
        %671 = vmatpush2.msra.mxu0 0.0
        %672 = vmatprep.subr.mxu0 0.0
        %673 = vmatpush2.msra.mxu0 0.0
        %674 = vmatprep.subr.mxu0 0.0
        %675 = vmatpush2.msra.mxu0 0.0
        %676 = vmatprep.subr.mxu0 0.0
        %677 = vmatpush2.msra.mxu0 0.0
        %678 = vmatprep.subr.mxu0 0.0
        %679 = vmatpush2.msra.mxu0 0.0
        %680 = vmatprep.subr.mxu0 0.0
        %681 = vmatpush2.msra.mxu0 0.0
        %682 = vmatprep.subr.mxu0 0.0
        %683 = vmatpush2.msra.mxu0 0.0
        %684 = vmatprep.subr.mxu0 0.0
        %685 = vmatpush2.msra.mxu0 0.0
        %686 = vmatprep.subr.mxu0 0.0
        %687 = vmatpush2.msra.mxu0 0.0
        %688 = vmatprep.subr.mxu0 0.0
        %689 = vmatpush2.msra.mxu0 0.0
        %690 = vmatprep.subr.mxu0 0.0
        %691 = vmatpush2.msra.mxu0 0.0
        %692 = vmatprep.mubr.f32.mxu0 0.0
        %693 = vmatmul.mubr.f32.gmra.mxu0 %v626
        %v694 = vpop.f32.mrf.mxu0
        %v695 = vadd.f32 0.0, %v694
        %v696 = vpop.f32.mrf.mxu0
        %697 = vdwg.mxu0
        %v698 = vadd.f32 %v622, %v695
        %v699 = vxor.u32 %v698, 2147483648
        %v700 = vmul.f32 %v699, 1.442695
        %v701 = vpow.pop %v700
        %v702 = vadd.f32 %v701, 1.0
        %v703 = vrcp.pop %v702
        %v704 = vmul.f32 1.0, %v703
        %v705 = vtanh.pop %v698
        %v706 = vmul.f32 %v704, %v614
        %708 = vrot.lane.b32.xlu0 %v705, 64
        %v709 = vpop.permute.xlu0 %708
        %v711 = vmul.f32 %v704, %v709
        %713 = vrot.lane.b32.xlu0 %v711, 32
        %v714 = vpop.permute.xlu0 %713
        %v716 = vadd.f32 %v706, %v714
        %v717 = vtanh.pop %v716
        %719 = vrot.lane.b32.xlu0 %v717, 64
        %v720 = vpop.permute.xlu0 %719
        %v722 = vmul.f32 %v704, %v720
        %s723 = scalar_lea.vmem [#allocation2], 24
        %v724 = vld [vmem:[%s723] sm:$0xff]
        %726 = vrot.lane.b32.xlu0 %v722, 32
        %v727 = vpop.permute.xlu0 %726
        %v728 = vsel %vm278, %v727, 0
        %730 = vmatprep.subr.mxu0 0.0
        %731 = vmatpush1.msra.mxu0 0.0
        %732 = vmatprep.subr.mxu0 0.0
        %733 = vmatpush1.msra.mxu0 0.0
        %734 = vmatprep.subr.mxu0 0.0
        %735 = vmatpush1.msra.mxu0 0.0
        %736 = vmatprep.subr.mxu0 0.0
        %737 = vmatpush1.msra.mxu0 0.0
        %738 = vmatprep.subr.mxu0 0.0
        %739 = vmatpush1.msra.mxu0 0.0
        %740 = vmatprep.subr.mxu0 0.0
        %741 = vmatpush1.msra.mxu0 0.0
        %742 = vmatprep.subr.mxu0 0.0
        %743 = vmatpush1.msra.mxu0 0.0
        %744 = vmatprep.subr.mxu0 0.0
        %745 = vmatpush1.msra.mxu0 0.0
        %746 = vmatprep.subr.mxu0 0.0
        %747 = vmatpush1.msra.mxu0 0.0
        %748 = vmatprep.subr.mxu0 0.0
        %749 = vmatpush1.msra.mxu0 0.0
        %750 = vmatprep.subr.mxu0 0.0
        %751 = vmatpush1.msra.mxu0 0.0
        %752 = vmatprep.subr.mxu0 0.0
        %753 = vmatpush1.msra.mxu0 0.0
        %754 = vmatprep.subr.mxu0 0.0
        %755 = vmatpush1.msra.mxu0 %v419
        %756 = vmatprep.subr.mxu0 0.0
        %757 = vmatpush1.msra.mxu0 %v418
        %758 = vmatprep.subr.mxu0 0.0
        %759 = vmatpush1.msra.mxu0 %v417
        %760 = vmatprep.subr.mxu0 0.0
        %761 = vmatpush1.msra.mxu0 %v416
        %762 = vmatprep.subr.mxu0 0.0
        %763 = vmatpush2.msra.mxu0 0.0
        %764 = vmatprep.subr.mxu0 0.0
        %765 = vmatpush2.msra.mxu0 0.0
        %766 = vmatprep.subr.mxu0 0.0
        %767 = vmatpush2.msra.mxu0 0.0
        %768 = vmatprep.subr.mxu0 0.0
        %769 = vmatpush2.msra.mxu0 0.0
        %770 = vmatprep.subr.mxu0 0.0
        %771 = vmatpush2.msra.mxu0 0.0
        %772 = vmatprep.subr.mxu0 0.0
        %773 = vmatpush2.msra.mxu0 0.0
        %774 = vmatprep.subr.mxu0 0.0
        %775 = vmatpush2.msra.mxu0 0.0
        %776 = vmatprep.subr.mxu0 0.0
        %777 = vmatpush2.msra.mxu0 0.0
        %778 = vmatprep.subr.mxu0 0.0
        %779 = vmatpush2.msra.mxu0 0.0
        %780 = vmatprep.subr.mxu0 0.0
        %781 = vmatpush2.msra.mxu0 0.0
        %782 = vmatprep.subr.mxu0 0.0
        %783 = vmatpush2.msra.mxu0 0.0
        %784 = vmatprep.subr.mxu0 0.0
        %785 = vmatpush2.msra.mxu0 0.0
        %786 = vmatprep.subr.mxu0 0.0
        %787 = vmatpush2.msra.mxu0 0.0
        %788 = vmatprep.subr.mxu0 0.0
        %789 = vmatpush2.msra.mxu0 0.0
        %790 = vmatprep.subr.mxu0 0.0
        %791 = vmatpush2.msra.mxu0 0.0
        %792 = vmatprep.subr.mxu0 0.0
        %793 = vmatpush2.msra.mxu0 0.0
        %794 = vmatprep.mubr.f32.mxu0 0.0
        %795 = vmatmul.mubr.f32.gmra.mxu0 %v728
        %v796 = vpop.f32.mrf.mxu0
        %v797 = vadd.f32 0.0, %v796
        %v798 = vpop.f32.mrf.mxu0
        %799 = vdwg.mxu0
        %v800 = vadd.f32 %v724, %v797
        %v801 = vxor.u32 %v800, 2147483648
        %v802 = vmul.f32 %v801, 1.442695
        %v803 = vpow.pop %v802
        %v804 = vadd.f32 %v803, 1.0
        %v805 = vrcp.pop %v804
        %v806 = vmul.f32 1.0, %v805
        %v807 = vtanh.pop %v800
        %v808 = vmul.f32 %v806, %v716
        %810 = vrot.lane.b32.xlu0 %v807, 64
        %v811 = vpop.permute.xlu0 %810
        %v813 = vmul.f32 %v806, %v811
        %815 = vrot.lane.b32.xlu0 %v813, 32
        %v816 = vpop.permute.xlu0 %815
        %v818 = vadd.f32 %v808, %v816
        %v819 = vtanh.pop %v818
        %821 = vrot.lane.b32.xlu0 %v819, 64
        %v822 = vpop.permute.xlu0 %821
        %v824 = vmul.f32 %v806, %v822
        %s825 = scalar_lea.vmem [#allocation2], 32
        %v826 = vld [vmem:[%s825] sm:$0xff]
        %828 = vrot.lane.b32.xlu0 %v824, 32
        %v829 = vpop.permute.xlu0 %828
        %v830 = vsel %vm278, %v829, 0
        %832 = vmatprep.subr.mxu0 0.0
        %833 = vmatpush1.msra.mxu0 0.0
        %834 = vmatprep.subr.mxu0 0.0
        %835 = vmatpush1.msra.mxu0 0.0
        %836 = vmatprep.subr.mxu0 0.0
        %837 = vmatpush1.msra.mxu0 0.0
        %838 = vmatprep.subr.mxu0 0.0
        %839 = vmatpush1.msra.mxu0 0.0
        %840 = vmatprep.subr.mxu0 0.0
        %841 = vmatpush1.msra.mxu0 0.0
        %842 = vmatprep.subr.mxu0 0.0
        %843 = vmatpush1.msra.mxu0 0.0
        %844 = vmatprep.subr.mxu0 0.0
        %845 = vmatpush1.msra.mxu0 0.0
        %846 = vmatprep.subr.mxu0 0.0
        %847 = vmatpush1.msra.mxu0 0.0
        %848 = vmatprep.subr.mxu0 0.0
        %849 = vmatpush1.msra.mxu0 0.0
        %850 = vmatprep.subr.mxu0 0.0
        %851 = vmatpush1.msra.mxu0 0.0
        %852 = vmatprep.subr.mxu0 0.0
        %853 = vmatpush1.msra.mxu0 0.0
        %854 = vmatprep.subr.mxu0 0.0
        %855 = vmatpush1.msra.mxu0 0.0
        %856 = vmatprep.subr.mxu0 0.0
        %857 = vmatpush1.msra.mxu0 %v419
        %858 = vmatprep.subr.mxu0 0.0
        %859 = vmatpush1.msra.mxu0 %v418
        %860 = vmatprep.subr.mxu0 0.0
        %861 = vmatpush1.msra.mxu0 %v417
        %862 = vmatprep.subr.mxu0 0.0
        %863 = vmatpush1.msra.mxu0 %v416
        %864 = vmatprep.subr.mxu0 0.0
        %865 = vmatpush2.msra.mxu0 0.0
        %866 = vmatprep.subr.mxu0 0.0
        %867 = vmatpush2.msra.mxu0 0.0
        %868 = vmatprep.subr.mxu0 0.0
        %869 = vmatpush2.msra.mxu0 0.0
        %870 = vmatprep.subr.mxu0 0.0
        %871 = vmatpush2.msra.mxu0 0.0
        %872 = vmatprep.subr.mxu0 0.0
        %873 = vmatpush2.msra.mxu0 0.0
        %874 = vmatprep.subr.mxu0 0.0
        %875 = vmatpush2.msra.mxu0 0.0
        %876 = vmatprep.subr.mxu0 0.0
        %877 = vmatpush2.msra.mxu0 0.0
        %878 = vmatprep.subr.mxu0 0.0
        %879 = vmatpush2.msra.mxu0 0.0
        %880 = vmatprep.subr.mxu0 0.0
        %881 = vmatpush2.msra.mxu0 0.0
        %882 = vmatprep.subr.mxu0 0.0
        %883 = vmatpush2.msra.mxu0 0.0
        %884 = vmatprep.subr.mxu0 0.0
        %885 = vmatpush2.msra.mxu0 0.0
        %886 = vmatprep.subr.mxu0 0.0
        %887 = vmatpush2.msra.mxu0 0.0
        %888 = vmatprep.subr.mxu0 0.0
        %889 = vmatpush2.msra.mxu0 0.0
        %890 = vmatprep.subr.mxu0 0.0
        %891 = vmatpush2.msra.mxu0 0.0
        %892 = vmatprep.subr.mxu0 0.0
        %893 = vmatpush2.msra.mxu0 0.0
        %894 = vmatprep.subr.mxu0 0.0
        %895 = vmatpush2.msra.mxu0 0.0
        %896 = vmatprep.mubr.f32.mxu0 0.0
        %897 = vmatmul.mubr.f32.gmra.mxu0 %v830
        %v898 = vpop.f32.mrf.mxu0
        %v899 = vadd.f32 0.0, %v898
        %v900 = vpop.f32.mrf.mxu0
        %901 = vdwg.mxu0
        %v902 = vadd.f32 %v826, %v899
        %v903 = vxor.u32 %v902, 2147483648
        %v904 = vmul.f32 %v903, 1.442695
        %v905 = vpow.pop %v904
        %v906 = vadd.f32 %v905, 1.0
        %v907 = vrcp.pop %v906
        %v908 = vmul.f32 1.0, %v907
        %v909 = vtanh.pop %v902
        %v910 = vmul.f32 %v908, %v818
        %912 = vrot.lane.b32.xlu0 %v909, 64
        %v913 = vpop.permute.xlu0 %912
        %v915 = vmul.f32 %v908, %v913
        %917 = vrot.lane.b32.xlu0 %v915, 32
        %v918 = vpop.permute.xlu0 %917
        %v920 = vadd.f32 %v910, %v918
        %v921 = vtanh.pop %v920
        %923 = vrot.lane.b32.xlu0 %v921, 64
        %v924 = vpop.permute.xlu0 %923
        %v926 = vmul.f32 %v908, %v924
        %s927 = scalar_lea.vmem [#allocation2], 40
        %v928 = vld [vmem:[%s927] sm:$0xff]
        %930 = vrot.lane.b32.xlu0 %v926, 32
        %v931 = vpop.permute.xlu0 %930
        %v932 = vsel %vm278, %v931, 0
        %934 = vmatprep.subr.mxu0 0.0
        %935 = vmatpush1.msra.mxu0 0.0
        %936 = vmatprep.subr.mxu0 0.0
        %937 = vmatpush1.msra.mxu0 0.0
        %938 = vmatprep.subr.mxu0 0.0
        %939 = vmatpush1.msra.mxu0 0.0
        %940 = vmatprep.subr.mxu0 0.0
        %941 = vmatpush1.msra.mxu0 0.0
        %942 = vmatprep.subr.mxu0 0.0
        %943 = vmatpush1.msra.mxu0 0.0
        %944 = vmatprep.subr.mxu0 0.0
        %945 = vmatpush1.msra.mxu0 0.0
        %946 = vmatprep.subr.mxu0 0.0
        %947 = vmatpush1.msra.mxu0 0.0
        %948 = vmatprep.subr.mxu0 0.0
        %949 = vmatpush1.msra.mxu0 0.0
        %950 = vmatprep.subr.mxu0 0.0
        %951 = vmatpush1.msra.mxu0 0.0
        %952 = vmatprep.subr.mxu0 0.0
        %953 = vmatpush1.msra.mxu0 0.0
        %954 = vmatprep.subr.mxu0 0.0
        %955 = vmatpush1.msra.mxu0 0.0
        %956 = vmatprep.subr.mxu0 0.0
        %957 = vmatpush1.msra.mxu0 0.0
        %958 = vmatprep.subr.mxu0 0.0
        %959 = vmatpush1.msra.mxu0 %v419
        %960 = vmatprep.subr.mxu0 0.0
        %961 = vmatpush1.msra.mxu0 %v418
        %962 = vmatprep.subr.mxu0 0.0
        %963 = vmatpush1.msra.mxu0 %v417
        %964 = vmatprep.subr.mxu0 0.0
        %965 = vmatpush1.msra.mxu0 %v416
        %966 = vmatprep.subr.mxu0 0.0
        %967 = vmatpush2.msra.mxu0 0.0
        %968 = vmatprep.subr.mxu0 0.0
        %969 = vmatpush2.msra.mxu0 0.0
        %970 = vmatprep.subr.mxu0 0.0
        %971 = vmatpush2.msra.mxu0 0.0
        %972 = vmatprep.subr.mxu0 0.0
        %973 = vmatpush2.msra.mxu0 0.0
        %974 = vmatprep.subr.mxu0 0.0
        %975 = vmatpush2.msra.mxu0 0.0
        %976 = vmatprep.subr.mxu0 0.0
        %977 = vmatpush2.msra.mxu0 0.0
        %978 = vmatprep.subr.mxu0 0.0
        %979 = vmatpush2.msra.mxu0 0.0
        %980 = vmatprep.subr.mxu0 0.0
        %981 = vmatpush2.msra.mxu0 0.0
        %982 = vmatprep.subr.mxu0 0.0
        %983 = vmatpush2.msra.mxu0 0.0
        %984 = vmatprep.subr.mxu0 0.0
        %985 = vmatpush2.msra.mxu0 0.0
        %986 = vmatprep.subr.mxu0 0.0
        %987 = vmatpush2.msra.mxu0 0.0
        %988 = vmatprep.subr.mxu0 0.0
        %989 = vmatpush2.msra.mxu0 0.0
        %990 = vmatprep.subr.mxu0 0.0
        %991 = vmatpush2.msra.mxu0 0.0
        %992 = vmatprep.subr.mxu0 0.0
        %993 = vmatpush2.msra.mxu0 0.0
        %994 = vmatprep.subr.mxu0 0.0
        %995 = vmatpush2.msra.mxu0 0.0
        %996 = vmatprep.subr.mxu0 0.0
        %997 = vmatpush2.msra.mxu0 0.0
        %998 = vmatprep.mubr.f32.mxu0 0.0
        %999 = vmatmul.mubr.f32.gmra.mxu0 %v932
        %v1000 = vpop.f32.mrf.mxu0
        %v1001 = vadd.f32 0.0, %v1000
        %v1002 = vpop.f32.mrf.mxu0
        %1003 = vdwg.mxu0
        %v1004 = vadd.f32 %v928, %v1001
        %v1005 = vxor.u32 %v1004, 2147483648
        %v1006 = vmul.f32 %v1005, 1.442695
        %v1007 = vpow.pop %v1006
        %v1008 = vadd.f32 %v1007, 1.0
        %v1009 = vrcp.pop %v1008
        %v1010 = vmul.f32 1.0, %v1009
        %v1011 = vtanh.pop %v1004
        %v1012 = vmul.f32 %v1010, %v920
        %1014 = vrot.lane.b32.xlu0 %v1011, 64
        %v1015 = vpop.permute.xlu0 %1014
        %v1017 = vmul.f32 %v1010, %v1015
        %1019 = vrot.lane.b32.xlu0 %v1017, 32
        %v1020 = vpop.permute.xlu0 %1019
        %v1022 = vadd.f32 %v1012, %v1020
        %v1023 = vtanh.pop %v1022
        %1025 = vrot.lane.b32.xlu0 %v1023, 64
        %v1026 = vpop.permute.xlu0 %1025
        %v1028 = vmul.f32 %v1010, %v1026
        %s1029 = scalar_lea.vmem [#allocation2], 48
        %v1030 = vld [vmem:[%s1029] sm:$0xff]
        %1032 = vrot.lane.b32.xlu0 %v1028, 32
        %v1033 = vpop.permute.xlu0 %1032
        %v1034 = vsel %vm278, %v1033, 0
        %1036 = vmatprep.subr.mxu0 0.0
        %1037 = vmatpush1.msra.mxu0 0.0
        %1038 = vmatprep.subr.mxu0 0.0
        %1039 = vmatpush1.msra.mxu0 0.0
        %1040 = vmatprep.subr.mxu0 0.0
        %1041 = vmatpush1.msra.mxu0 0.0
        %1042 = vmatprep.subr.mxu0 0.0
        %1043 = vmatpush1.msra.mxu0 0.0
        %1044 = vmatprep.subr.mxu0 0.0
        %1045 = vmatpush1.msra.mxu0 0.0
        %1046 = vmatprep.subr.mxu0 0.0
        %1047 = vmatpush1.msra.mxu0 0.0
        %1048 = vmatprep.subr.mxu0 0.0
        %1049 = vmatpush1.msra.mxu0 0.0
        %1050 = vmatprep.subr.mxu0 0.0
        %1051 = vmatpush1.msra.mxu0 0.0
        %1052 = vmatprep.subr.mxu0 0.0
        %1053 = vmatpush1.msra.mxu0 0.0
        %1054 = vmatprep.subr.mxu0 0.0
        %1055 = vmatpush1.msra.mxu0 0.0
        %1056 = vmatprep.subr.mxu0 0.0
        %1057 = vmatpush1.msra.mxu0 0.0
        %1058 = vmatprep.subr.mxu0 0.0
        %1059 = vmatpush1.msra.mxu0 0.0
        %1060 = vmatprep.subr.mxu0 0.0
        %1061 = vmatpush1.msra.mxu0 %v419
        %1062 = vmatprep.subr.mxu0 0.0
        %1063 = vmatpush1.msra.mxu0 %v418
        %1064 = vmatprep.subr.mxu0 0.0
        %1065 = vmatpush1.msra.mxu0 %v417
        %1066 = vmatprep.subr.mxu0 0.0
        %1067 = vmatpush1.msra.mxu0 %v416
        %1068 = vmatprep.subr.mxu0 0.0
        %1069 = vmatpush2.msra.mxu0 0.0
        %1070 = vmatprep.subr.mxu0 0.0
        %1071 = vmatpush2.msra.mxu0 0.0
        %1072 = vmatprep.subr.mxu0 0.0
        %1073 = vmatpush2.msra.mxu0 0.0
        %1074 = vmatprep.subr.mxu0 0.0
        %1075 = vmatpush2.msra.mxu0 0.0
        %1076 = vmatprep.subr.mxu0 0.0
        %1077 = vmatpush2.msra.mxu0 0.0
        %1078 = vmatprep.subr.mxu0 0.0
        %1079 = vmatpush2.msra.mxu0 0.0
        %1080 = vmatprep.subr.mxu0 0.0
        %1081 = vmatpush2.msra.mxu0 0.0
        %1082 = vmatprep.subr.mxu0 0.0
        %1083 = vmatpush2.msra.mxu0 0.0
        %1084 = vmatprep.subr.mxu0 0.0
        %1085 = vmatpush2.msra.mxu0 0.0
        %1086 = vmatprep.subr.mxu0 0.0
        %1087 = vmatpush2.msra.mxu0 0.0
        %1088 = vmatprep.subr.mxu0 0.0
        %1089 = vmatpush2.msra.mxu0 0.0
        %1090 = vmatprep.subr.mxu0 0.0
        %1091 = vmatpush2.msra.mxu0 0.0
        %1092 = vmatprep.subr.mxu0 0.0
        %1093 = vmatpush2.msra.mxu0 0.0
        %1094 = vmatprep.subr.mxu0 0.0
        %1095 = vmatpush2.msra.mxu0 0.0
        %1096 = vmatprep.subr.mxu0 0.0
        %1097 = vmatpush2.msra.mxu0 0.0
        %1098 = vmatprep.subr.mxu0 0.0
        %1099 = vmatpush2.msra.mxu0 0.0
        %1100 = vmatprep.mubr.f32.mxu0 0.0
        %1101 = vmatmul.mubr.f32.gmra.mxu0 %v1034
        %v1102 = vpop.f32.mrf.mxu0
        %v1103 = vadd.f32 0.0, %v1102
        %v1104 = vpop.f32.mrf.mxu0
        %1105 = vdwg.mxu0
        %v1106 = vadd.f32 %v1030, %v1103
        %v1107 = vxor.u32 %v1106, 2147483648
        %v1108 = vmul.f32 %v1107, 1.442695
        %v1109 = vpow.pop %v1108
        %v1110 = vadd.f32 %v1109, 1.0
        %v1111 = vrcp.pop %v1110
        %v1112 = vmul.f32 1.0, %v1111
        %v1113 = vtanh.pop %v1106
        %v1114 = vmul.f32 %v1112, %v1022
        %1116 = vrot.lane.b32.xlu0 %v1113, 64
        %v1117 = vpop.permute.xlu0 %1116
        %v1119 = vmul.f32 %v1112, %v1117
        %1121 = vrot.lane.b32.xlu0 %v1119, 32
        %v1122 = vpop.permute.xlu0 %1121
        %v1124 = vadd.f32 %v1114, %v1122
        %v1125 = vtanh.pop %v1124
        %1127 = vrot.lane.b32.xlu0 %v1125, 64
        %v1128 = vpop.permute.xlu0 %1127
        %v1130 = vmul.f32 %v1112, %v1128
        %s1131 = scalar_lea.vmem [#allocation2], 56
        %v1132 = vld [vmem:[%s1131] sm:$0xff]
        %1134 = vrot.lane.b32.xlu0 %v1130, 32
        %v1135 = vpop.permute.xlu0 %1134
        %v1136 = vsel %vm278, %v1135, 0
        %1138 = vmatprep.subr.mxu0 0.0
        %1139 = vmatpush1.msra.mxu0 0.0
        %1140 = vmatprep.subr.mxu0 0.0
        %1141 = vmatpush1.msra.mxu0 0.0
        %1142 = vmatprep.subr.mxu0 0.0
        %1143 = vmatpush1.msra.mxu0 0.0
        %1144 = vmatprep.subr.mxu0 0.0
        %1145 = vmatpush1.msra.mxu0 0.0
        %1146 = vmatprep.subr.mxu0 0.0
        %1147 = vmatpush1.msra.mxu0 0.0
        %1148 = vmatprep.subr.mxu0 0.0
        %1149 = vmatpush1.msra.mxu0 0.0
        %1150 = vmatprep.subr.mxu0 0.0
        %1151 = vmatpush1.msra.mxu0 0.0
        %1152 = vmatprep.subr.mxu0 0.0
        %1153 = vmatpush1.msra.mxu0 0.0
        %1154 = vmatprep.subr.mxu0 0.0
        %1155 = vmatpush1.msra.mxu0 0.0
        %1156 = vmatprep.subr.mxu0 0.0
        %1157 = vmatpush1.msra.mxu0 0.0
        %1158 = vmatprep.subr.mxu0 0.0
        %1159 = vmatpush1.msra.mxu0 0.0
        %1160 = vmatprep.subr.mxu0 0.0
        %1161 = vmatpush1.msra.mxu0 0.0
        %1162 = vmatprep.subr.mxu0 0.0
        %1163 = vmatpush1.msra.mxu0 %v419
        %1164 = vmatprep.subr.mxu0 0.0
        %1165 = vmatpush1.msra.mxu0 %v418
        %1166 = vmatprep.subr.mxu0 0.0
        %1167 = vmatpush1.msra.mxu0 %v417
        %1168 = vmatprep.subr.mxu0 0.0
        %1169 = vmatpush1.msra.mxu0 %v416
        %1170 = vmatprep.subr.mxu0 0.0
        %1171 = vmatpush2.msra.mxu0 0.0
        %1172 = vmatprep.subr.mxu0 0.0
        %1173 = vmatpush2.msra.mxu0 0.0
        %1174 = vmatprep.subr.mxu0 0.0
        %1175 = vmatpush2.msra.mxu0 0.0
        %1176 = vmatprep.subr.mxu0 0.0
        %1177 = vmatpush2.msra.mxu0 0.0
        %1178 = vmatprep.subr.mxu0 0.0
        %1179 = vmatpush2.msra.mxu0 0.0
        %1180 = vmatprep.subr.mxu0 0.0
        %1181 = vmatpush2.msra.mxu0 0.0
        %1182 = vmatprep.subr.mxu0 0.0
        %1183 = vmatpush2.msra.mxu0 0.0
        %1184 = vmatprep.subr.mxu0 0.0
        %1185 = vmatpush2.msra.mxu0 0.0
        %1186 = vmatprep.subr.mxu0 0.0
        %1187 = vmatpush2.msra.mxu0 0.0
        %1188 = vmatprep.subr.mxu0 0.0
        %1189 = vmatpush2.msra.mxu0 0.0
        %1190 = vmatprep.subr.mxu0 0.0
        %1191 = vmatpush2.msra.mxu0 0.0
        %1192 = vmatprep.subr.mxu0 0.0
        %1193 = vmatpush2.msra.mxu0 0.0
        %1194 = vmatprep.subr.mxu0 0.0
        %1195 = vmatpush2.msra.mxu0 0.0
        %1196 = vmatprep.subr.mxu0 0.0
        %1197 = vmatpush2.msra.mxu0 0.0
        %1198 = vmatprep.subr.mxu0 0.0
        %1199 = vmatpush2.msra.mxu0 0.0
        %1200 = vmatprep.subr.mxu0 0.0
        %1201 = vmatpush2.msra.mxu0 0.0
        %1202 = vmatprep.mubr.f32.mxu0 0.0
        %1203 = vmatmul.mubr.f32.gmra.mxu0 %v1136
        %v1204 = vpop.f32.mrf.mxu0
        %v1205 = vadd.f32 0.0, %v1204
        %v1206 = vpop.f32.mrf.mxu0
        %1207 = vdwg.mxu0
        %v1208 = vadd.f32 %v1132, %v1205
        %v1209 = vxor.u32 %v1208, 2147483648
        %v1210 = vmul.f32 %v1209, 1.442695
        %v1211 = vpow.pop %v1210
        %v1212 = vadd.f32 %v1211, 1.0
        %v1213 = vrcp.pop %v1212
        %v1214 = vmul.f32 1.0, %v1213
        %v1215 = vtanh.pop %v1208
        %v1216 = vmul.f32 %v1214, %v1124
        %1218 = vrot.lane.b32.xlu0 %v1215, 64
        %v1219 = vpop.permute.xlu0 %1218
        %v1221 = vmul.f32 %v1214, %v1219
        %1223 = vrot.lane.b32.xlu0 %v1221, 32
        %v1224 = vpop.permute.xlu0 %1223
        %v1226 = vadd.f32 %v1216, %v1224
        %v1227 = vtanh.pop %v1226
        %1229 = vrot.lane.b32.xlu0 %v1227, 64
        %v1230 = vpop.permute.xlu0 %1229
        %v1232 = vmul.f32 %v1214, %v1230
        %1234 = vrot.lane.b32.xlu0 %v1232, 32
        %v1235 = vpop.permute.xlu0 %1234
        %1237 = vst.msk [vmem:[%s258] sm:$0xff] %vm278, %v1235
        %s1238 = sand.u32 %s115, 1
        %s1239 = scalar_lea.sflag [#allocation5], %s1238
        %s1240 = sand.u32 %s115, 1
        %s1241 = smul.addr %s1240, 8
        %s1242 = scalar_lea.vmem [#allocation4], %s1241
        // Predicated region
        $region75: #{lstm_classifier0_forward.1} parent=69 // pred_check
          %p1243 = pneg %p125
        $region76: #{lstm_classifier0_forward.1} parent=69 // pred_check_branch
          %1245 = sbr.rel (%p1243) target = $region78
        $region77: #{lstm_classifier0_forward.1} parent=69 // pred_region
          %s1247 = ssub.s32 128, 128
          %1248 = vsyncadd %s1239, %s1247
          %s1249 = smul.addr %s18, 128
          %s1250 = scalar_lea.hbm %s4, %s1249
          %s1252 = sshll.u32 %s1242, 4
          %s1253 = int_to_ptr.vmem [resolvable:$true] %s1252
          %1255 = dma.vmem_to_hbm [thread:$0]  %s1253, 128, %s1250, %s1239
        $region78: #{lstm_classifier0_forward.1} parent=69 // pred_fallthru
          _
      $region70: #{lstm_classifier0_forward.1} parent=5 // pred_fallthru
        _
      %p1256 = scmp.le.s32.totalorder 2, %s13
      // Predicated region
      $region79: #{lstm_classifier0_forward.1} parent=5 // pred_check
        %p1257 = pneg %p1256
      $region80: #{lstm_classifier0_forward.1} parent=5 // pred_check_branch
        %1259 = sbr.rel (%p1257) target = $region82
      $region81: #{lstm_classifier0_forward.1} parent=5 // pred_region
        %s1260 = ssub.s32 %s13, 2
        // Predicated region
        $region83: #{lstm_classifier0_forward.1} parent=81 // pred_check
          %p1261 = pneg %p131
        $region84: #{lstm_classifier0_forward.1} parent=81 // pred_check_branch
          %1263 = sbr.rel (%p1261) target = $region86
        $region85: #{lstm_classifier0_forward.1} parent=81 // pred_region
          %s1264 = sand.u32 %s116, 1
          %s1265 = scalar_lea.sflag [#allocation5], %s1264
          %s1266 = sand.u32 %s116, 1
          %s1267 = smul.addr %s1266, 8
          %s1268 = scalar_lea.vmem [#allocation4], %s1267
          %1269 = dma.done %s1265, 128
        $region86: #{lstm_classifier0_forward.1} parent=81 // pred_fallthru
          _
      $region82: #{lstm_classifier0_forward.1} parent=5 // pred_fallthru
        _
    $region6: #{lstm_classifier0_forward.1} parent=1 // loop_footer
      %s17 = sadd.s32 1, %s13
    $region7: #{lstm_classifier0_forward.1} parent=1 // loop_footer_branch
      %12 = sbr.rel target = $region3
    $region8: #{lstm_classifier0_forward.1} parent=1 // loop_exit
      _
    %1270 = vsyncpa [#allocation5], 1
    %s1271 = scalar_lea.sflag [#allocation5], 1
    %1272 = vsyncpa %s1271, 1

</llo_original>
